<compile_context>
chip_gen: v7x
topology: tpu7x:2x2x1
jax: 0.10.0
libtpu: 0.0.40
codegen_flags: <defaults>
</compile_context>

<pallas_src>
import functools
import jax
import jax.numpy as jnp
from jax.experimental import pallas as pl
from jax.experimental.pallas import tpu as pltpu


# ----------------------------------------------------------------------------
# Single fused kernel: conv+relu -> feature attn -> LSTM -> time attn -> MLP
# ----------------------------------------------------------------------------
def _fused_kernel(patches_ref, wc_ref, wih_ref, whh_ref, wstack_ref, wl_ref,
                  packed_ref, o_ref, *, bb, seq, hidden, n_layers,
                  out_size, out_is_one):
    B, S, H = bb, seq, hidden
    f32, bf16 = jnp.float32, jnp.bfloat16

    # ---- unpack the single packed small-parameter array (one-time slices) ---
    fab = packed_ref[0:1, 0:H]                              # feature-attn bias
    b1 = packed_ref[0:1, H:2 * H]                           # first_layer bias
    saw = packed_ref[0:1, 2 * H:3 * H]                      # step-attn weight
    sab = packed_ref[0:1, 3 * H:3 * H + 1]                  # step-attn bias
    blstm = packed_ref[1:2, :]                              # b_ih + b_hh (reordered)
    blast = packed_ref[2 + n_layers:3 + n_layers, 0:out_size]  # last layer bias (BN-folded)

    # ---- ConvLayer: ONE im2col matmul (+ReLU); bias absorbed via ones column -
    conv = jnp.maximum(
        jnp.dot(patches_ref[...], wc_ref[...], preferred_element_type=f32),
        0.0)                                                # (S*B, H) f32

    # ---- FeatureAttention: softmax over features, gate the conv output ------
    s = jnp.dot(conv.astype(bf16), wstack_ref[0],
                preferred_element_type=f32) + fab
    s = s - jnp.max(s, axis=-1, keepdims=True)
    e = jnp.exp(s)
    gate = e * pl.reciprocal(jnp.sum(e, axis=-1, keepdims=True), approx=True)
    fa = conv * gate                                        # (S*B, H)

    # ---- LSTM: hoisted input projection, then fully-unrolled recurrence -----
    xp = jnp.dot(fa.astype(bf16), wih_ref[...],
                 preferred_element_type=f32) + blstm        # (S*B, 4H)
    whh = whh_ref[...]                                      # (H, 4H) bf16
    lane = jax.lax.broadcasted_iota(jnp.int32, (B, 4 * H), 1)
    sig_mask = lane < 3 * H          # gate columns reordered to [i, f, o, g]
    h = jnp.zeros((B, H), f32)
    c = jnp.zeros((B, H), f32)
    hs, scores = [], []
    for t in range(S):
        g = xp[t * B:(t + 1) * B, :] + jnp.dot(
            h.astype(bf16), whh, preferred_element_type=f32)   # (B, 4H)
        act = jnp.where(sig_mask, jax.nn.sigmoid(g), jnp.tanh(g))
        ig = act[:, 0:H]
        fg = act[:, H:2 * H]
        og = act[:, 2 * H:3 * H]
        gg = act[:, 3 * H:4 * H]
        c = fg * c + ig * gg
        h = og * jnp.tanh(c)
        hs.append(h)                                        # stays in vregs
        scores.append(jnp.sum(h * saw, axis=-1, keepdims=True) + sab)  # (B,1)

    # ---- TimeStepAttention: softmax over time, fully vreg-resident ----------
    m = scores[0]
    for t in range(1, S):
        m = jnp.maximum(m, scores[t])
    es = [jnp.exp(sc - m) for sc in scores]
    denom = es[0]
    for t in range(1, S):
        denom = denom + es[t]
    inv = pl.reciprocal(denom, approx=True)
    pooled = es[0] * hs[0]
    for t in range(1, S):
        pooled = pooled + es[t] * hs[t]
    pooled = pooled * inv                                   # (B, H)

    # ---- MLP head (BatchNorm1d eval-mode affines folded into weights/biases) -
    x = jnp.tanh(jnp.dot(pooled.astype(bf16), wstack_ref[1],
                         preferred_element_type=f32) + b1)
    for i in range(n_layers):                               # dropout: eval -> identity
        x = jnp.tanh(jnp.dot(x.astype(bf16), wstack_ref[2 + i],
                             preferred_element_type=f32)
                     + packed_ref[2 + i:3 + i, 0:H])
    if out_is_one:
        # H -> 1 projection via VPU multiply + lane reduction (no 1-wide MXU dot)
        y = jnp.sum(x * wl_ref[...], axis=-1, keepdims=True) + blast
    else:
        y = jnp.dot(x.astype(bf16), wl_ref[...],
                    preferred_element_type=f32) + blast
    o_ref[...] = jax.nn.sigmoid(y)


# ----------------------------------------------------------------------------
# Parameter construction (deterministic, synthetic; torch-style layouts)
# ----------------------------------------------------------------------------
def make_params(key, input_size, hidden, output_size, n_layers, ksize=7):
    def u(k, shape, scale=0.1):
        return jax.random.uniform(k, shape, jnp.float32, -scale, scale)

    H, F, O, L = hidden, input_size, output_size, n_layers
    ks = jax.random.split(key, 16)
    return dict(
        conv_w=u(ks[0], (H, F, ksize)), conv_b=u(ks[1], (H,)),     # Conv1d
        fa_w=u(ks[2], (H, H)), fa_b=u(ks[3], (H,)),                # FeatureAttention
        w_ih=u(ks[4], (4 * H, H)), w_hh=u(ks[5], (4 * H, H)),      # LSTM (gates i,f,g,o)
        b_ih=u(ks[6], (4 * H,)), b_hh=u(ks[7], (4 * H,)),
        sa_w=u(ks[8], (1, H)), sa_b=u(ks[9], (1,)),                # TimeStepAttention
        w1=u(ks[10], (H, H)), b1=u(ks[11], (H,)),                  # first_layer
        ws=u(ks[12], (L, H, H)), bs=u(ks[13], (L, H)),             # hidden layers
        bn_gamma=jnp.ones((L, H), jnp.float32),                    # BatchNorm1d (eval)
        bn_beta=jnp.zeros((L, H), jnp.float32),
        bn_mean=jnp.zeros((L, H), jnp.float32),
        bn_var=jnp.ones((L, H), jnp.float32),
        wl=u(ks[14], (O, H)), bl=u(ks[15], (O,)),                  # last_layer
        bnl_gamma=jnp.ones((O,), jnp.float32),                     # last_norm (eval)
        bnl_beta=jnp.zeros((O,), jnp.float32),
        bnl_mean=jnp.zeros((O,), jnp.float32),
        bnl_var=jnp.ones((O,), jnp.float32),
    )


def _reorder_gates(w):
    # torch LSTM gate order [i, f, g, o] -> [i, f, o, g] (contiguous sigmoid lanes)
    i, f, g, o = jnp.split(w, 4, axis=0)
    return jnp.concatenate([i, f, o, g], axis=0)


# ----------------------------------------------------------------------------
# Forward pass: one fused pallas_call, grid over 8-row batch blocks
# ----------------------------------------------------------------------------
def lstm_layered_extractors(x, p, *, hidden, output_size, n_layers, ksize=7):
    B, S, F = x.shape
    H, O, L = hidden, output_size, n_layers
    f32, bf16 = jnp.float32, jnp.bfloat16
    eps = 1e-5
    out_is_one = (O == 1)

    # ---- fold eval-mode BatchNorm1d into the preceding Linear layers --------
    bn_sc = p["bn_gamma"] / jnp.sqrt(p["bn_var"] + eps)             # (L, H)
    bn_sh = p["bn_beta"] - p["bn_mean"] * bn_sc
    ws_f = p["ws"] * bn_sc[:, :, None]                              # (L, out, in)
    bs_f = p["bs"] * bn_sc + bn_sh
    bnl_sc = p["bnl_gamma"] / jnp.sqrt(p["bnl_var"] + eps)          # (O,)
    bnl_sh = p["bnl_beta"] - p["bnl_mean"] * bnl_sc
    wl_f = p["wl"] * bnl_sc[:, None]                                # (O, H)
    bl_f = p["bl"] * bnl_sc + bnl_sh

    # ---- LSTM weights: gate reorder + transpose, bf16 operands --------------
    wih = _reorder_gates(p["w_ih"]).T.astype(bf16)                  # (H, 4H)
    whh = _reorder_gates(p["w_hh"]).T.astype(bf16)                  # (H, 4H)
    blstm = _reorder_gates(p["b_ih"] + p["b_hh"])                   # (4H,)

    # ---- stack all HxH weights into ONE bf16 input ---------------------------
    wstack = jnp.concatenate(
        [p["fa_w"].T[None], p["w1"].T[None], jnp.transpose(ws_f, (0, 2, 1))],
        axis=0).astype(bf16)                                        # (L+2, H, H)

    # ---- pack every small bias/vector param into ONE (L+3, 4H) f32 array -----
    row0 = jnp.zeros((4 * H,), f32)
    row0 = row0.at[0:H].set(p["fa_b"])
    row0 = row0.at[H:2 * H].set(p["b1"])
    row0 = row0.at[2 * H:3 * H].set(p["sa_w"].reshape(H))
    row0 = row0.at[3 * H].set(p["sa_b"][0])
    packed = jnp.zeros((3 + L, 4 * H), f32)
    packed = packed.at[0].set(row0)
    packed = packed.at[1].set(blstm)
    packed = packed.at[2:2 + L, 0:H].set(bs_f)
    packed = packed.at[2 + L, 0:O].set(bl_f)       # requires O <= 4H (true here)

    wl_in = (wl_f.reshape(1, H).astype(f32) if out_is_one
             else wl_f.T.astype(bf16))

    # ---- im2col patches per 8-row batch block (conv bias -> ones column) -----
    BB = 8                                          # one full sublane group
    nb = pl.cdiv(B, BB)
    BP = nb * BB
    pad = (ksize - 1) // 2
    xb = jnp.pad(x, ((0, BP - B), (0, 0), (0, 0)))                  # (BP, S, F)
    xb = xb.reshape(nb, BB, S, F).transpose(0, 2, 1, 3)             # (nb, S, BB, F)
    xb = jnp.pad(xb, ((0, 0), (pad, pad), (0, 0), (0, 0)))          # time same-pad
    patches = jnp.concatenate([xb[:, k:k + S] for k in range(ksize)], axis=-1)
    patches = patches.reshape(nb, S * BB, ksize * F)
    patches = jnp.concatenate(
        [patches, jnp.ones((nb, S * BB, 1), f32)], axis=-1).astype(bf16)
    KF1 = ksize * F + 1

    wc_aug = jnp.concatenate(
        [jnp.concatenate([p["conv_w"][:, :, k].T for k in range(ksize)], axis=0),
         p["conv_b"][None, :]], axis=0).astype(bf16)                # (KF1, H)

    kernel = functools.partial(
        _fused_kernel, bb=BB, seq=S, hidden=H, n_layers=L,
        out_size=O, out_is_one=out_is_one)

    out = pl.pallas_call(
        kernel,
        out_shape=jax.ShapeDtypeStruct((nb, BB, O), f32),
        grid=(nb,),
        in_specs=[
            pl.BlockSpec((None, S * BB, KF1), lambda i: (i, 0, 0)),   # per-block patches
            pl.BlockSpec(wc_aug.shape, lambda i: (0, 0)),             # weights stay
            pl.BlockSpec(wih.shape, lambda i: (0, 0)),                # VMEM-resident
            pl.BlockSpec(whh.shape, lambda i: (0, 0)),
            pl.BlockSpec(wstack.shape, lambda i: (0, 0, 0)),
            pl.BlockSpec(wl_in.shape, lambda i: (0, 0)),
            pl.BlockSpec(packed.shape, lambda i: (0, 0)),
        ],
        out_specs=pl.BlockSpec((None, BB, O), lambda i: (i, 0, 0)),
        compiler_params=pltpu.CompilerParams(
            dimension_semantics=("parallel",)),
    )(patches, wc_aug, wih, whh, wstack, wl_in, packed)

    return out.reshape(BP, O)[:B]


if __name__ == "__main__":
    B, S, F = 4, 8, 4          # batch, seq_len, input_size
    H, O, L = 32, 1, 10        # hidden_size, output_size, layers

    key = jax.random.PRNGKey(0)
    kx, kp = jax.random.split(key)
    x = jax.random.normal(kx, (B, S, F), jnp.float32)
    params = make_params(kp, F, H, O, L)

    fwd = jax.jit(functools.partial(
        lstm_layered_extractors, hidden=H, output_size=O, n_layers=L))
    y = fwd(x, params)
    jax.block_until_ready(y)
    assert y.shape == (B, O)
    assert bool(jnp.all(jnp.isfinite(y))) and bool(jnp.all((y > 0) & (y < 1)))
    print("KERNEL_OK")
</pallas_src>

<mosaic_0001>
module attributes {stable_mosaic.version = 11 : i64} {
  func.func @_fused_kernel(%arg0: i32, %arg1: memref<1x64x29xbf16, #tpu.memory_space<vmem>>, %arg2: memref<29x32xbf16, #tpu.memory_space<vmem>>, %arg3: memref<32x128xbf16, #tpu.memory_space<vmem>>, %arg4: memref<32x128xbf16, #tpu.memory_space<vmem>>, %arg5: memref<12x32x32xbf16, #tpu.memory_space<vmem>>, %arg6: memref<1x32xf32, #tpu.memory_space<vmem>>, %arg7: memref<13x128xf32, #tpu.memory_space<vmem>>, %arg8: memref<1x8x1xf32, #tpu.memory_space<vmem>>) attributes {dimension_semantics = [#tpu.dimension_semantics<parallel>], iteration_bounds = array<i64: 1>, scalar_prefetch = 0 : i64, scratch_operands = 0 : i64, tpu.core_type = #tpu.core_type<tc>, window_params = [{transform_indices = @transform_0, window_bounds = array<i64: 1, 64, 29>}, {pipeline_mode = #tpu.pipeline_mode<synchronous>, transform_indices = @transform_1, window_bounds = array<i64: 29, 32>}, {pipeline_mode = #tpu.pipeline_mode<synchronous>, transform_indices = @transform_2, window_bounds = array<i64: 32, 128>}, {pipeline_mode = #tpu.pipeline_mode<synchronous>, transform_indices = @transform_3, window_bounds = array<i64: 32, 128>}, {pipeline_mode = #tpu.pipeline_mode<synchronous>, transform_indices = @transform_4, window_bounds = array<i64: 12, 32, 32>}, {pipeline_mode = #tpu.pipeline_mode<synchronous>, transform_indices = @transform_5, window_bounds = array<i64: 1, 32>}, {pipeline_mode = #tpu.pipeline_mode<synchronous>, transform_indices = @transform_6, window_bounds = array<i64: 13, 128>}, {transform_indices = @transform_7, window_bounds = array<i64: 1, 8, 1>}]} {
    %c0 = arith.constant 0 : index
    %c0_0 = arith.constant 0 : index
    %0 = vector.load %arg7[%c0, %c0_0] : memref<13x128xf32, #tpu.memory_space<vmem>>, vector<1x32xf32>
    %c0_1 = arith.constant 0 : index
    %c32 = arith.constant 32 : index
    %1 = vector.load %arg7[%c0_1, %c32] : memref<13x128xf32, #tpu.memory_space<vmem>>, vector<1x32xf32>
    %c0_2 = arith.constant 0 : index
    %c64 = arith.constant 64 : index
    %2 = vector.load %arg7[%c0_2, %c64] : memref<13x128xf32, #tpu.memory_space<vmem>>, vector<1x32xf32>
    %c0_3 = arith.constant 0 : index
    %c96 = arith.constant 96 : index
    %3 = vector.load %arg7[%c0_3, %c96] : memref<13x128xf32, #tpu.memory_space<vmem>>, vector<1x1xf32>
    %c1 = arith.constant 1 : index
    %c0_4 = arith.constant 0 : index
    %4 = vector.load %arg7[%c1, %c0_4] : memref<13x128xf32, #tpu.memory_space<vmem>>, vector<1x128xf32>
    %c12 = arith.constant 12 : index
    %c0_5 = arith.constant 0 : index
    %5 = vector.load %arg7[%c12, %c0_5] : memref<13x128xf32, #tpu.memory_space<vmem>>, vector<1x1xf32>
    %c0_6 = arith.constant 0 : index
    %c0_7 = arith.constant 0 : index
    %c0_8 = arith.constant 0 : index
    %6 = vector.load %arg1[%c0_6, %c0_7, %c0_8] : memref<1x64x29xbf16, #tpu.memory_space<vmem>>, vector<1x64x29xbf16>
    %7 = vector.shape_cast %6 : vector<1x64x29xbf16> to vector<64x29xbf16>
    %c0_9 = arith.constant 0 : index
    %c0_10 = arith.constant 0 : index
    %8 = vector.load %arg2[%c0_9, %c0_10] : memref<29x32xbf16, #tpu.memory_space<vmem>>, vector<29x32xbf16>
    %cst = arith.constant dense<0.000000e+00> : vector<64x32xf32>
    %9 = tpu.matmul %7, %8, %cst {dimension_numbers = #tpu.dot_dimension_numbers<[1], [0], [0], [1], [0, 0, 1, 1], [], []>} : vector<64x29xbf16>, vector<29x32xbf16>, vector<64x32xf32> -> vector<64x32xf32>
    %cst_11 = arith.constant 0.000000e+00 : f32
    %10 = vector.broadcast %cst_11 : f32 to vector<64x32xf32>
    %11 = arith.maximumf %9, %10 : vector<64x32xf32>
    %12 = arith.truncf %11 : vector<64x32xf32> to vector<64x32xbf16>
    %c0_12 = arith.constant 0 : index
    %c0_13 = arith.constant 0 : index
    %c0_14 = arith.constant 0 : index
    %13 = vector.load %arg5[%c0_12, %c0_13, %c0_14] : memref<12x32x32xbf16, #tpu.memory_space<vmem>>, vector<1x32x32xbf16>
    %14 = vector.shape_cast %13 : vector<1x32x32xbf16> to vector<32x32xbf16>
    %cst_15 = arith.constant dense<0.000000e+00> : vector<64x32xf32>
    %15 = tpu.matmul %12, %14, %cst_15 {dimension_numbers = #tpu.dot_dimension_numbers<[1], [0], [0], [1], [0, 0, 1, 1], [], []>} : vector<64x32xbf16>, vector<32x32xbf16>, vector<64x32xf32> -> vector<64x32xf32>
    %16 = vector.broadcast %0 : vector<1x32xf32> to vector<64x32xf32>
    %17 = arith.addf %15, %16 : vector<64x32xf32>
    %cst_16 = arith.constant dense<0xFF800000> : vector<64xf32>
    %18 = vector.multi_reduction <maximumf>, %17, %cst_16 [1] : vector<64x32xf32> to vector<64xf32>
    %19 = vector.shape_cast %18 : vector<64xf32> to vector<64x1xf32>
    %20 = vector.broadcast %19 : vector<64x1xf32> to vector<64x32xf32>
    %21 = arith.subf %17, %20 : vector<64x32xf32>
    %22 = math.exp %21 : vector<64x32xf32>
    %cst_17 = arith.constant dense<0.000000e+00> : vector<64xf32>
    %23 = vector.multi_reduction <add>, %22, %cst_17 [1] : vector<64x32xf32> to vector<64xf32>
    %24 = vector.shape_cast %23 : vector<64xf32> to vector<64x1xf32>
    %25 = tpu.reciprocal %24 {approx = true} : vector<64x1xf32> -> vector<64x1xf32>
    %26 = vector.broadcast %25 : vector<64x1xf32> to vector<64x32xf32>
    %27 = arith.mulf %22, %26 : vector<64x32xf32>
    %28 = arith.mulf %11, %27 : vector<64x32xf32>
    %29 = arith.truncf %28 : vector<64x32xf32> to vector<64x32xbf16>
    %c0_18 = arith.constant 0 : index
    %c0_19 = arith.constant 0 : index
    %30 = vector.load %arg3[%c0_18, %c0_19] : memref<32x128xbf16, #tpu.memory_space<vmem>>, vector<32x128xbf16>
    %cst_20 = arith.constant dense<0.000000e+00> : vector<64x128xf32>
    %31 = tpu.matmul %29, %30, %cst_20 {dimension_numbers = #tpu.dot_dimension_numbers<[1], [0], [0], [1], [0, 0, 1, 1], [], []>} : vector<64x32xbf16>, vector<32x128xbf16>, vector<64x128xf32> -> vector<64x128xf32>
    %32 = vector.broadcast %4 : vector<1x128xf32> to vector<64x128xf32>
    %33 = arith.addf %31, %32 : vector<64x128xf32>
    %c0_21 = arith.constant 0 : index
    %c0_22 = arith.constant 0 : index
    %34 = vector.load %arg4[%c0_21, %c0_22] : memref<32x128xbf16, #tpu.memory_space<vmem>>, vector<32x128xbf16>
    %35 = tpu.iota {dimensions = array<i32: 1>} : vector<8x128xi32>
    %c96_i32 = arith.constant 96 : i32
    %36 = vector.broadcast %c96_i32 : i32 to vector<8x128xi32>
    %37 = arith.cmpi slt, %35, %36 : vector<8x128xi32>
    %cst_23 = arith.constant 0.000000e+00 : f32
    %38 = vector.broadcast %cst_23 : f32 to vector<8x32xf32>
    %cst_24 = arith.constant 0.000000e+00 : f32
    %39 = vector.broadcast %cst_24 : f32 to vector<8x32xf32>
    %40 = vector.extract_strided_slice %33 {offsets = [0, 0], sizes = [8, 128], strides = [1, 1]} : vector<64x128xf32> to vector<8x128xf32>
    %41 = arith.truncf %38 : vector<8x32xf32> to vector<8x32xbf16>
    %cst_25 = arith.constant dense<0.000000e+00> : vector<8x128xf32>
    %42 = tpu.matmul %41, %34, %cst_25 {dimension_numbers = #tpu.dot_dimension_numbers<[1], [0], [0], [1], [0, 0, 1, 1], [], []>} : vector<8x32xbf16>, vector<32x128xbf16>, vector<8x128xf32> -> vector<8x128xf32>
    %43 = arith.addf %40, %42 : vector<8x128xf32>
    %44 = arith.negf %43 : vector<8x128xf32>
    %45 = math.exp %44 : vector<8x128xf32>
    %cst_26 = arith.constant 1.000000e+00 : f32
    %46 = vector.broadcast %cst_26 : f32 to vector<8x128xf32>
    %47 = arith.addf %46, %45 : vector<8x128xf32>
    %48 = arith.divf %46, %47 : vector<8x128xf32>
    %49 = math.tanh %43 : vector<8x128xf32>
    %50 = arith.select %37, %48, %49 : vector<8x128xi1>, vector<8x128xf32>
    %51 = vector.extract_strided_slice %50 {offsets = [0, 0], sizes = [8, 32], strides = [1, 1]} : vector<8x128xf32> to vector<8x32xf32>
    %52 = vector.extract_strided_slice %50 {offsets = [0, 32], sizes = [8, 32], strides = [1, 1]} : vector<8x128xf32> to vector<8x32xf32>
    %53 = vector.extract_strided_slice %50 {offsets = [0, 64], sizes = [8, 32], strides = [1, 1]} : vector<8x128xf32> to vector<8x32xf32>
    %54 = vector.extract_strided_slice %50 {offsets = [0, 96], sizes = [8, 32], strides = [1, 1]} : vector<8x128xf32> to vector<8x32xf32>
    %55 = arith.mulf %52, %39 : vector<8x32xf32>
    %56 = arith.mulf %51, %54 : vector<8x32xf32>
    %57 = arith.addf %55, %56 : vector<8x32xf32>
    %58 = math.tanh %57 : vector<8x32xf32>
    %59 = arith.mulf %53, %58 : vector<8x32xf32>
    %60 = vector.broadcast %2 : vector<1x32xf32> to vector<8x32xf32>
    %61 = arith.mulf %59, %60 : vector<8x32xf32>
    %cst_27 = arith.constant dense<0.000000e+00> : vector<8xf32>
    %62 = vector.multi_reduction <add>, %61, %cst_27 [1] : vector<8x32xf32> to vector<8xf32>
    %63 = vector.shape_cast %62 : vector<8xf32> to vector<8x1xf32>
    %64 = vector.broadcast %3 : vector<1x1xf32> to vector<8x1xf32>
    %65 = arith.addf %63, %64 : vector<8x1xf32>
    %66 = vector.extract_strided_slice %33 {offsets = [8, 0], sizes = [8, 128], strides = [1, 1]} : vector<64x128xf32> to vector<8x128xf32>
    %67 = arith.truncf %59 : vector<8x32xf32> to vector<8x32xbf16>
    %cst_28 = arith.constant dense<0.000000e+00> : vector<8x128xf32>
    %68 = tpu.matmul %67, %34, %cst_28 {dimension_numbers = #tpu.dot_dimension_numbers<[1], [0], [0], [1], [0, 0, 1, 1], [], []>} : vector<8x32xbf16>, vector<32x128xbf16>, vector<8x128xf32> -> vector<8x128xf32>
    %69 = arith.addf %66, %68 : vector<8x128xf32>
    %70 = arith.negf %69 : vector<8x128xf32>
    %71 = math.exp %70 : vector<8x128xf32>
    %cst_29 = arith.constant 1.000000e+00 : f32
    %72 = vector.broadcast %cst_29 : f32 to vector<8x128xf32>
    %73 = arith.addf %72, %71 : vector<8x128xf32>
    %74 = arith.divf %72, %73 : vector<8x128xf32>
    %75 = math.tanh %69 : vector<8x128xf32>
    %76 = arith.select %37, %74, %75 : vector<8x128xi1>, vector<8x128xf32>
    %77 = vector.extract_strided_slice %76 {offsets = [0, 0], sizes = [8, 32], strides = [1, 1]} : vector<8x128xf32> to vector<8x32xf32>
    %78 = vector.extract_strided_slice %76 {offsets = [0, 32], sizes = [8, 32], strides = [1, 1]} : vector<8x128xf32> to vector<8x32xf32>
    %79 = vector.extract_strided_slice %76 {offsets = [0, 64], sizes = [8, 32], strides = [1, 1]} : vector<8x128xf32> to vector<8x32xf32>
    %80 = vector.extract_strided_slice %76 {offsets = [0, 96], sizes = [8, 32], strides = [1, 1]} : vector<8x128xf32> to vector<8x32xf32>
    %81 = arith.mulf %78, %57 : vector<8x32xf32>
    %82 = arith.mulf %77, %80 : vector<8x32xf32>
    %83 = arith.addf %81, %82 : vector<8x32xf32>
    %84 = math.tanh %83 : vector<8x32xf32>
    %85 = arith.mulf %79, %84 : vector<8x32xf32>
    %86 = vector.broadcast %2 : vector<1x32xf32> to vector<8x32xf32>
    %87 = arith.mulf %85, %86 : vector<8x32xf32>
    %cst_30 = arith.constant dense<0.000000e+00> : vector<8xf32>
    %88 = vector.multi_reduction <add>, %87, %cst_30 [1] : vector<8x32xf32> to vector<8xf32>
    %89 = vector.shape_cast %88 : vector<8xf32> to vector<8x1xf32>
    %90 = vector.broadcast %3 : vector<1x1xf32> to vector<8x1xf32>
    %91 = arith.addf %89, %90 : vector<8x1xf32>
    %92 = vector.extract_strided_slice %33 {offsets = [16, 0], sizes = [8, 128], strides = [1, 1]} : vector<64x128xf32> to vector<8x128xf32>
    %93 = arith.truncf %85 : vector<8x32xf32> to vector<8x32xbf16>
    %cst_31 = arith.constant dense<0.000000e+00> : vector<8x128xf32>
    %94 = tpu.matmul %93, %34, %cst_31 {dimension_numbers = #tpu.dot_dimension_numbers<[1], [0], [0], [1], [0, 0, 1, 1], [], []>} : vector<8x32xbf16>, vector<32x128xbf16>, vector<8x128xf32> -> vector<8x128xf32>
    %95 = arith.addf %92, %94 : vector<8x128xf32>
    %96 = arith.negf %95 : vector<8x128xf32>
    %97 = math.exp %96 : vector<8x128xf32>
    %cst_32 = arith.constant 1.000000e+00 : f32
    %98 = vector.broadcast %cst_32 : f32 to vector<8x128xf32>
    %99 = arith.addf %98, %97 : vector<8x128xf32>
    %100 = arith.divf %98, %99 : vector<8x128xf32>
    %101 = math.tanh %95 : vector<8x128xf32>
    %102 = arith.select %37, %100, %101 : vector<8x128xi1>, vector<8x128xf32>
    %103 = vector.extract_strided_slice %102 {offsets = [0, 0], sizes = [8, 32], strides = [1, 1]} : vector<8x128xf32> to vector<8x32xf32>
    %104 = vector.extract_strided_slice %102 {offsets = [0, 32], sizes = [8, 32], strides = [1, 1]} : vector<8x128xf32> to vector<8x32xf32>
    %105 = vector.extract_strided_slice %102 {offsets = [0, 64], sizes = [8, 32], strides = [1, 1]} : vector<8x128xf32> to vector<8x32xf32>
    %106 = vector.extract_strided_slice %102 {offsets = [0, 96], sizes = [8, 32], strides = [1, 1]} : vector<8x128xf32> to vector<8x32xf32>
    %107 = arith.mulf %104, %83 : vector<8x32xf32>
    %108 = arith.mulf %103, %106 : vector<8x32xf32>
    %109 = arith.addf %107, %108 : vector<8x32xf32>
    %110 = math.tanh %109 : vector<8x32xf32>
    %111 = arith.mulf %105, %110 : vector<8x32xf32>
    %112 = vector.broadcast %2 : vector<1x32xf32> to vector<8x32xf32>
    %113 = arith.mulf %111, %112 : vector<8x32xf32>
    %cst_33 = arith.constant dense<0.000000e+00> : vector<8xf32>
    %114 = vector.multi_reduction <add>, %113, %cst_33 [1] : vector<8x32xf32> to vector<8xf32>
    %115 = vector.shape_cast %114 : vector<8xf32> to vector<8x1xf32>
    %116 = vector.broadcast %3 : vector<1x1xf32> to vector<8x1xf32>
    %117 = arith.addf %115, %116 : vector<8x1xf32>
    %118 = vector.extract_strided_slice %33 {offsets = [24, 0], sizes = [8, 128], strides = [1, 1]} : vector<64x128xf32> to vector<8x128xf32>
    %119 = arith.truncf %111 : vector<8x32xf32> to vector<8x32xbf16>
    %cst_34 = arith.constant dense<0.000000e+00> : vector<8x128xf32>
    %120 = tpu.matmul %119, %34, %cst_34 {dimension_numbers = #tpu.dot_dimension_numbers<[1], [0], [0], [1], [0, 0, 1, 1], [], []>} : vector<8x32xbf16>, vector<32x128xbf16>, vector<8x128xf32> -> vector<8x128xf32>
    %121 = arith.addf %118, %120 : vector<8x128xf32>
    %122 = arith.negf %121 : vector<8x128xf32>
    %123 = math.exp %122 : vector<8x128xf32>
    %cst_35 = arith.constant 1.000000e+00 : f32
    %124 = vector.broadcast %cst_35 : f32 to vector<8x128xf32>
    %125 = arith.addf %124, %123 : vector<8x128xf32>
    %126 = arith.divf %124, %125 : vector<8x128xf32>
    %127 = math.tanh %121 : vector<8x128xf32>
    %128 = arith.select %37, %126, %127 : vector<8x128xi1>, vector<8x128xf32>
    %129 = vector.extract_strided_slice %128 {offsets = [0, 0], sizes = [8, 32], strides = [1, 1]} : vector<8x128xf32> to vector<8x32xf32>
    %130 = vector.extract_strided_slice %128 {offsets = [0, 32], sizes = [8, 32], strides = [1, 1]} : vector<8x128xf32> to vector<8x32xf32>
    %131 = vector.extract_strided_slice %128 {offsets = [0, 64], sizes = [8, 32], strides = [1, 1]} : vector<8x128xf32> to vector<8x32xf32>
    %132 = vector.extract_strided_slice %128 {offsets = [0, 96], sizes = [8, 32], strides = [1, 1]} : vector<8x128xf32> to vector<8x32xf32>
    %133 = arith.mulf %130, %109 : vector<8x32xf32>
    %134 = arith.mulf %129, %132 : vector<8x32xf32>
    %135 = arith.addf %133, %134 : vector<8x32xf32>
    %136 = math.tanh %135 : vector<8x32xf32>
    %137 = arith.mulf %131, %136 : vector<8x32xf32>
    %138 = vector.broadcast %2 : vector<1x32xf32> to vector<8x32xf32>
    %139 = arith.mulf %137, %138 : vector<8x32xf32>
    %cst_36 = arith.constant dense<0.000000e+00> : vector<8xf32>
    %140 = vector.multi_reduction <add>, %139, %cst_36 [1] : vector<8x32xf32> to vector<8xf32>
    %141 = vector.shape_cast %140 : vector<8xf32> to vector<8x1xf32>
    %142 = vector.broadcast %3 : vector<1x1xf32> to vector<8x1xf32>
    %143 = arith.addf %141, %142 : vector<8x1xf32>
    %144 = vector.extract_strided_slice %33 {offsets = [32, 0], sizes = [8, 128], strides = [1, 1]} : vector<64x128xf32> to vector<8x128xf32>
    %145 = arith.truncf %137 : vector<8x32xf32> to vector<8x32xbf16>
    %cst_37 = arith.constant dense<0.000000e+00> : vector<8x128xf32>
    %146 = tpu.matmul %145, %34, %cst_37 {dimension_numbers = #tpu.dot_dimension_numbers<[1], [0], [0], [1], [0, 0, 1, 1], [], []>} : vector<8x32xbf16>, vector<32x128xbf16>, vector<8x128xf32> -> vector<8x128xf32>
    %147 = arith.addf %144, %146 : vector<8x128xf32>
    %148 = arith.negf %147 : vector<8x128xf32>
    %149 = math.exp %148 : vector<8x128xf32>
    %cst_38 = arith.constant 1.000000e+00 : f32
    %150 = vector.broadcast %cst_38 : f32 to vector<8x128xf32>
    %151 = arith.addf %150, %149 : vector<8x128xf32>
    %152 = arith.divf %150, %151 : vector<8x128xf32>
    %153 = math.tanh %147 : vector<8x128xf32>
    %154 = arith.select %37, %152, %153 : vector<8x128xi1>, vector<8x128xf32>
    %155 = vector.extract_strided_slice %154 {offsets = [0, 0], sizes = [8, 32], strides = [1, 1]} : vector<8x128xf32> to vector<8x32xf32>
    %156 = vector.extract_strided_slice %154 {offsets = [0, 32], sizes = [8, 32], strides = [1, 1]} : vector<8x128xf32> to vector<8x32xf32>
    %157 = vector.extract_strided_slice %154 {offsets = [0, 64], sizes = [8, 32], strides = [1, 1]} : vector<8x128xf32> to vector<8x32xf32>
    %158 = vector.extract_strided_slice %154 {offsets = [0, 96], sizes = [8, 32], strides = [1, 1]} : vector<8x128xf32> to vector<8x32xf32>
    %159 = arith.mulf %156, %135 : vector<8x32xf32>
    %160 = arith.mulf %155, %158 : vector<8x32xf32>
    %161 = arith.addf %159, %160 : vector<8x32xf32>
    %162 = math.tanh %161 : vector<8x32xf32>
    %163 = arith.mulf %157, %162 : vector<8x32xf32>
    %164 = vector.broadcast %2 : vector<1x32xf32> to vector<8x32xf32>
    %165 = arith.mulf %163, %164 : vector<8x32xf32>
    %cst_39 = arith.constant dense<0.000000e+00> : vector<8xf32>
    %166 = vector.multi_reduction <add>, %165, %cst_39 [1] : vector<8x32xf32> to vector<8xf32>
    %167 = vector.shape_cast %166 : vector<8xf32> to vector<8x1xf32>
    %168 = vector.broadcast %3 : vector<1x1xf32> to vector<8x1xf32>
    %169 = arith.addf %167, %168 : vector<8x1xf32>
    %170 = vector.extract_strided_slice %33 {offsets = [40, 0], sizes = [8, 128], strides = [1, 1]} : vector<64x128xf32> to vector<8x128xf32>
    %171 = arith.truncf %163 : vector<8x32xf32> to vector<8x32xbf16>
    %cst_40 = arith.constant dense<0.000000e+00> : vector<8x128xf32>
    %172 = tpu.matmul %171, %34, %cst_40 {dimension_numbers = #tpu.dot_dimension_numbers<[1], [0], [0], [1], [0, 0, 1, 1], [], []>} : vector<8x32xbf16>, vector<32x128xbf16>, vector<8x128xf32> -> vector<8x128xf32>
    %173 = arith.addf %170, %172 : vector<8x128xf32>
    %174 = arith.negf %173 : vector<8x128xf32>
    %175 = math.exp %174 : vector<8x128xf32>
    %cst_41 = arith.constant 1.000000e+00 : f32
    %176 = vector.broadcast %cst_41 : f32 to vector<8x128xf32>
    %177 = arith.addf %176, %175 : vector<8x128xf32>
    %178 = arith.divf %176, %177 : vector<8x128xf32>
    %179 = math.tanh %173 : vector<8x128xf32>
    %180 = arith.select %37, %178, %179 : vector<8x128xi1>, vector<8x128xf32>
    %181 = vector.extract_strided_slice %180 {offsets = [0, 0], sizes = [8, 32], strides = [1, 1]} : vector<8x128xf32> to vector<8x32xf32>
    %182 = vector.extract_strided_slice %180 {offsets = [0, 32], sizes = [8, 32], strides = [1, 1]} : vector<8x128xf32> to vector<8x32xf32>
    %183 = vector.extract_strided_slice %180 {offsets = [0, 64], sizes = [8, 32], strides = [1, 1]} : vector<8x128xf32> to vector<8x32xf32>
    %184 = vector.extract_strided_slice %180 {offsets = [0, 96], sizes = [8, 32], strides = [1, 1]} : vector<8x128xf32> to vector<8x32xf32>
    %185 = arith.mulf %182, %161 : vector<8x32xf32>
    %186 = arith.mulf %181, %184 : vector<8x32xf32>
    %187 = arith.addf %185, %186 : vector<8x32xf32>
    %188 = math.tanh %187 : vector<8x32xf32>
    %189 = arith.mulf %183, %188 : vector<8x32xf32>
    %190 = vector.broadcast %2 : vector<1x32xf32> to vector<8x32xf32>
    %191 = arith.mulf %189, %190 : vector<8x32xf32>
    %cst_42 = arith.constant dense<0.000000e+00> : vector<8xf32>
    %192 = vector.multi_reduction <add>, %191, %cst_42 [1] : vector<8x32xf32> to vector<8xf32>
    %193 = vector.shape_cast %192 : vector<8xf32> to vector<8x1xf32>
    %194 = vector.broadcast %3 : vector<1x1xf32> to vector<8x1xf32>
    %195 = arith.addf %193, %194 : vector<8x1xf32>
    %196 = vector.extract_strided_slice %33 {offsets = [48, 0], sizes = [8, 128], strides = [1, 1]} : vector<64x128xf32> to vector<8x128xf32>
    %197 = arith.truncf %189 : vector<8x32xf32> to vector<8x32xbf16>
    %cst_43 = arith.constant dense<0.000000e+00> : vector<8x128xf32>
    %198 = tpu.matmul %197, %34, %cst_43 {dimension_numbers = #tpu.dot_dimension_numbers<[1], [0], [0], [1], [0, 0, 1, 1], [], []>} : vector<8x32xbf16>, vector<32x128xbf16>, vector<8x128xf32> -> vector<8x128xf32>
    %199 = arith.addf %196, %198 : vector<8x128xf32>
    %200 = arith.negf %199 : vector<8x128xf32>
    %201 = math.exp %200 : vector<8x128xf32>
    %cst_44 = arith.constant 1.000000e+00 : f32
    %202 = vector.broadcast %cst_44 : f32 to vector<8x128xf32>
    %203 = arith.addf %202, %201 : vector<8x128xf32>
    %204 = arith.divf %202, %203 : vector<8x128xf32>
    %205 = math.tanh %199 : vector<8x128xf32>
    %206 = arith.select %37, %204, %205 : vector<8x128xi1>, vector<8x128xf32>
    %207 = vector.extract_strided_slice %206 {offsets = [0, 0], sizes = [8, 32], strides = [1, 1]} : vector<8x128xf32> to vector<8x32xf32>
    %208 = vector.extract_strided_slice %206 {offsets = [0, 32], sizes = [8, 32], strides = [1, 1]} : vector<8x128xf32> to vector<8x32xf32>
    %209 = vector.extract_strided_slice %206 {offsets = [0, 64], sizes = [8, 32], strides = [1, 1]} : vector<8x128xf32> to vector<8x32xf32>
    %210 = vector.extract_strided_slice %206 {offsets = [0, 96], sizes = [8, 32], strides = [1, 1]} : vector<8x128xf32> to vector<8x32xf32>
    %211 = arith.mulf %208, %187 : vector<8x32xf32>
    %212 = arith.mulf %207, %210 : vector<8x32xf32>
    %213 = arith.addf %211, %212 : vector<8x32xf32>
    %214 = math.tanh %213 : vector<8x32xf32>
    %215 = arith.mulf %209, %214 : vector<8x32xf32>
    %216 = vector.broadcast %2 : vector<1x32xf32> to vector<8x32xf32>
    %217 = arith.mulf %215, %216 : vector<8x32xf32>
    %cst_45 = arith.constant dense<0.000000e+00> : vector<8xf32>
    %218 = vector.multi_reduction <add>, %217, %cst_45 [1] : vector<8x32xf32> to vector<8xf32>
    %219 = vector.shape_cast %218 : vector<8xf32> to vector<8x1xf32>
    %220 = vector.broadcast %3 : vector<1x1xf32> to vector<8x1xf32>
    %221 = arith.addf %219, %220 : vector<8x1xf32>
    %222 = vector.extract_strided_slice %33 {offsets = [56, 0], sizes = [8, 128], strides = [1, 1]} : vector<64x128xf32> to vector<8x128xf32>
    %223 = arith.truncf %215 : vector<8x32xf32> to vector<8x32xbf16>
    %cst_46 = arith.constant dense<0.000000e+00> : vector<8x128xf32>
    %224 = tpu.matmul %223, %34, %cst_46 {dimension_numbers = #tpu.dot_dimension_numbers<[1], [0], [0], [1], [0, 0, 1, 1], [], []>} : vector<8x32xbf16>, vector<32x128xbf16>, vector<8x128xf32> -> vector<8x128xf32>
    %225 = arith.addf %222, %224 : vector<8x128xf32>
    %226 = arith.negf %225 : vector<8x128xf32>
    %227 = math.exp %226 : vector<8x128xf32>
    %cst_47 = arith.constant 1.000000e+00 : f32
    %228 = vector.broadcast %cst_47 : f32 to vector<8x128xf32>
    %229 = arith.addf %228, %227 : vector<8x128xf32>
    %230 = arith.divf %228, %229 : vector<8x128xf32>
    %231 = math.tanh %225 : vector<8x128xf32>
    %232 = arith.select %37, %230, %231 : vector<8x128xi1>, vector<8x128xf32>
    %233 = vector.extract_strided_slice %232 {offsets = [0, 0], sizes = [8, 32], strides = [1, 1]} : vector<8x128xf32> to vector<8x32xf32>
    %234 = vector.extract_strided_slice %232 {offsets = [0, 32], sizes = [8, 32], strides = [1, 1]} : vector<8x128xf32> to vector<8x32xf32>
    %235 = vector.extract_strided_slice %232 {offsets = [0, 64], sizes = [8, 32], strides = [1, 1]} : vector<8x128xf32> to vector<8x32xf32>
    %236 = vector.extract_strided_slice %232 {offsets = [0, 96], sizes = [8, 32], strides = [1, 1]} : vector<8x128xf32> to vector<8x32xf32>
    %237 = arith.mulf %234, %213 : vector<8x32xf32>
    %238 = arith.mulf %233, %236 : vector<8x32xf32>
    %239 = arith.addf %237, %238 : vector<8x32xf32>
    %240 = math.tanh %239 : vector<8x32xf32>
    %241 = arith.mulf %235, %240 : vector<8x32xf32>
    %242 = vector.broadcast %2 : vector<1x32xf32> to vector<8x32xf32>
    %243 = arith.mulf %241, %242 : vector<8x32xf32>
    %cst_48 = arith.constant dense<0.000000e+00> : vector<8xf32>
    %244 = vector.multi_reduction <add>, %243, %cst_48 [1] : vector<8x32xf32> to vector<8xf32>
    %245 = vector.shape_cast %244 : vector<8xf32> to vector<8x1xf32>
    %246 = vector.broadcast %3 : vector<1x1xf32> to vector<8x1xf32>
    %247 = arith.addf %245, %246 : vector<8x1xf32>
    %248 = arith.maximumf %65, %91 : vector<8x1xf32>
    %249 = arith.maximumf %248, %117 : vector<8x1xf32>
    %250 = arith.maximumf %249, %143 : vector<8x1xf32>
    %251 = arith.maximumf %250, %169 : vector<8x1xf32>
    %252 = arith.maximumf %251, %195 : vector<8x1xf32>
    %253 = arith.maximumf %252, %221 : vector<8x1xf32>
    %254 = arith.maximumf %253, %247 : vector<8x1xf32>
    %255 = arith.subf %65, %254 : vector<8x1xf32>
    %256 = math.exp %255 : vector<8x1xf32>
    %257 = arith.subf %91, %254 : vector<8x1xf32>
    %258 = math.exp %257 : vector<8x1xf32>
    %259 = arith.subf %117, %254 : vector<8x1xf32>
    %260 = math.exp %259 : vector<8x1xf32>
    %261 = arith.subf %143, %254 : vector<8x1xf32>
    %262 = math.exp %261 : vector<8x1xf32>
    %263 = arith.subf %169, %254 : vector<8x1xf32>
    %264 = math.exp %263 : vector<8x1xf32>
    %265 = arith.subf %195, %254 : vector<8x1xf32>
    %266 = math.exp %265 : vector<8x1xf32>
    %267 = arith.subf %221, %254 : vector<8x1xf32>
    %268 = math.exp %267 : vector<8x1xf32>
    %269 = arith.subf %247, %254 : vector<8x1xf32>
    %270 = math.exp %269 : vector<8x1xf32>
    %271 = arith.addf %256, %258 : vector<8x1xf32>
    %272 = arith.addf %271, %260 : vector<8x1xf32>
    %273 = arith.addf %272, %262 : vector<8x1xf32>
    %274 = arith.addf %273, %264 : vector<8x1xf32>
    %275 = arith.addf %274, %266 : vector<8x1xf32>
    %276 = arith.addf %275, %268 : vector<8x1xf32>
    %277 = arith.addf %276, %270 : vector<8x1xf32>
    %278 = tpu.reciprocal %277 {approx = true} : vector<8x1xf32> -> vector<8x1xf32>
    %279 = vector.broadcast %256 : vector<8x1xf32> to vector<8x32xf32>
    %280 = arith.mulf %279, %59 : vector<8x32xf32>
    %281 = vector.broadcast %258 : vector<8x1xf32> to vector<8x32xf32>
    %282 = arith.mulf %281, %85 : vector<8x32xf32>
    %283 = arith.addf %280, %282 : vector<8x32xf32>
    %284 = vector.broadcast %260 : vector<8x1xf32> to vector<8x32xf32>
    %285 = arith.mulf %284, %111 : vector<8x32xf32>
    %286 = arith.addf %283, %285 : vector<8x32xf32>
    %287 = vector.broadcast %262 : vector<8x1xf32> to vector<8x32xf32>
    %288 = arith.mulf %287, %137 : vector<8x32xf32>
    %289 = arith.addf %286, %288 : vector<8x32xf32>
    %290 = vector.broadcast %264 : vector<8x1xf32> to vector<8x32xf32>
    %291 = arith.mulf %290, %163 : vector<8x32xf32>
    %292 = arith.addf %289, %291 : vector<8x32xf32>
    %293 = vector.broadcast %266 : vector<8x1xf32> to vector<8x32xf32>
    %294 = arith.mulf %293, %189 : vector<8x32xf32>
    %295 = arith.addf %292, %294 : vector<8x32xf32>
    %296 = vector.broadcast %268 : vector<8x1xf32> to vector<8x32xf32>
    %297 = arith.mulf %296, %215 : vector<8x32xf32>
    %298 = arith.addf %295, %297 : vector<8x32xf32>
    %299 = vector.broadcast %270 : vector<8x1xf32> to vector<8x32xf32>
    %300 = arith.mulf %299, %241 : vector<8x32xf32>
    %301 = arith.addf %298, %300 : vector<8x32xf32>
    %302 = vector.broadcast %278 : vector<8x1xf32> to vector<8x32xf32>
    %303 = arith.mulf %301, %302 : vector<8x32xf32>
    %304 = arith.truncf %303 : vector<8x32xf32> to vector<8x32xbf16>
    %c1_49 = arith.constant 1 : index
    %c0_50 = arith.constant 0 : index
    %c0_51 = arith.constant 0 : index
    %305 = vector.load %arg5[%c1_49, %c0_50, %c0_51] : memref<12x32x32xbf16, #tpu.memory_space<vmem>>, vector<1x32x32xbf16>
    %306 = vector.shape_cast %305 : vector<1x32x32xbf16> to vector<32x32xbf16>
    %cst_52 = arith.constant dense<0.000000e+00> : vector<8x32xf32>
    %307 = tpu.matmul %304, %306, %cst_52 {dimension_numbers = #tpu.dot_dimension_numbers<[1], [0], [0], [1], [0, 0, 1, 1], [], []>} : vector<8x32xbf16>, vector<32x32xbf16>, vector<8x32xf32> -> vector<8x32xf32>
    %308 = vector.broadcast %1 : vector<1x32xf32> to vector<8x32xf32>
    %309 = arith.addf %307, %308 : vector<8x32xf32>
    %310 = math.tanh %309 : vector<8x32xf32>
    %311 = arith.truncf %310 : vector<8x32xf32> to vector<8x32xbf16>
    %c2 = arith.constant 2 : index
    %c0_53 = arith.constant 0 : index
    %c0_54 = arith.constant 0 : index
    %312 = vector.load %arg5[%c2, %c0_53, %c0_54] : memref<12x32x32xbf16, #tpu.memory_space<vmem>>, vector<1x32x32xbf16>
    %313 = vector.shape_cast %312 : vector<1x32x32xbf16> to vector<32x32xbf16>
    %cst_55 = arith.constant dense<0.000000e+00> : vector<8x32xf32>
    %314 = tpu.matmul %311, %313, %cst_55 {dimension_numbers = #tpu.dot_dimension_numbers<[1], [0], [0], [1], [0, 0, 1, 1], [], []>} : vector<8x32xbf16>, vector<32x32xbf16>, vector<8x32xf32> -> vector<8x32xf32>
    %c2_56 = arith.constant 2 : index
    %c0_57 = arith.constant 0 : index
    %315 = vector.load %arg7[%c2_56, %c0_57] : memref<13x128xf32, #tpu.memory_space<vmem>>, vector<1x32xf32>
    %316 = vector.broadcast %315 : vector<1x32xf32> to vector<8x32xf32>
    %317 = arith.addf %314, %316 : vector<8x32xf32>
    %318 = math.tanh %317 : vector<8x32xf32>
    %319 = arith.truncf %318 : vector<8x32xf32> to vector<8x32xbf16>
    %c3 = arith.constant 3 : index
    %c0_58 = arith.constant 0 : index
    %c0_59 = arith.constant 0 : index
    %320 = vector.load %arg5[%c3, %c0_58, %c0_59] : memref<12x32x32xbf16, #tpu.memory_space<vmem>>, vector<1x32x32xbf16>
    %321 = vector.shape_cast %320 : vector<1x32x32xbf16> to vector<32x32xbf16>
    %cst_60 = arith.constant dense<0.000000e+00> : vector<8x32xf32>
    %322 = tpu.matmul %319, %321, %cst_60 {dimension_numbers = #tpu.dot_dimension_numbers<[1], [0], [0], [1], [0, 0, 1, 1], [], []>} : vector<8x32xbf16>, vector<32x32xbf16>, vector<8x32xf32> -> vector<8x32xf32>
    %c3_61 = arith.constant 3 : index
    %c0_62 = arith.constant 0 : index
    %323 = vector.load %arg7[%c3_61, %c0_62] : memref<13x128xf32, #tpu.memory_space<vmem>>, vector<1x32xf32>
    %324 = vector.broadcast %323 : vector<1x32xf32> to vector<8x32xf32>
    %325 = arith.addf %322, %324 : vector<8x32xf32>
    %326 = math.tanh %325 : vector<8x32xf32>
    %327 = arith.truncf %326 : vector<8x32xf32> to vector<8x32xbf16>
    %c4 = arith.constant 4 : index
    %c0_63 = arith.constant 0 : index
    %c0_64 = arith.constant 0 : index
    %328 = vector.load %arg5[%c4, %c0_63, %c0_64] : memref<12x32x32xbf16, #tpu.memory_space<vmem>>, vector<1x32x32xbf16>
    %329 = vector.shape_cast %328 : vector<1x32x32xbf16> to vector<32x32xbf16>
    %cst_65 = arith.constant dense<0.000000e+00> : vector<8x32xf32>
    %330 = tpu.matmul %327, %329, %cst_65 {dimension_numbers = #tpu.dot_dimension_numbers<[1], [0], [0], [1], [0, 0, 1, 1], [], []>} : vector<8x32xbf16>, vector<32x32xbf16>, vector<8x32xf32> -> vector<8x32xf32>
    %c4_66 = arith.constant 4 : index
    %c0_67 = arith.constant 0 : index
    %331 = vector.load %arg7[%c4_66, %c0_67] : memref<13x128xf32, #tpu.memory_space<vmem>>, vector<1x32xf32>
    %332 = vector.broadcast %331 : vector<1x32xf32> to vector<8x32xf32>
    %333 = arith.addf %330, %332 : vector<8x32xf32>
    %334 = math.tanh %333 : vector<8x32xf32>
    %335 = arith.truncf %334 : vector<8x32xf32> to vector<8x32xbf16>
    %c5 = arith.constant 5 : index
    %c0_68 = arith.constant 0 : index
    %c0_69 = arith.constant 0 : index
    %336 = vector.load %arg5[%c5, %c0_68, %c0_69] : memref<12x32x32xbf16, #tpu.memory_space<vmem>>, vector<1x32x32xbf16>
    %337 = vector.shape_cast %336 : vector<1x32x32xbf16> to vector<32x32xbf16>
    %cst_70 = arith.constant dense<0.000000e+00> : vector<8x32xf32>
    %338 = tpu.matmul %335, %337, %cst_70 {dimension_numbers = #tpu.dot_dimension_numbers<[1], [0], [0], [1], [0, 0, 1, 1], [], []>} : vector<8x32xbf16>, vector<32x32xbf16>, vector<8x32xf32> -> vector<8x32xf32>
    %c5_71 = arith.constant 5 : index
    %c0_72 = arith.constant 0 : index
    %339 = vector.load %arg7[%c5_71, %c0_72] : memref<13x128xf32, #tpu.memory_space<vmem>>, vector<1x32xf32>
    %340 = vector.broadcast %339 : vector<1x32xf32> to vector<8x32xf32>
    %341 = arith.addf %338, %340 : vector<8x32xf32>
    %342 = math.tanh %341 : vector<8x32xf32>
    %343 = arith.truncf %342 : vector<8x32xf32> to vector<8x32xbf16>
    %c6 = arith.constant 6 : index
    %c0_73 = arith.constant 0 : index
    %c0_74 = arith.constant 0 : index
    %344 = vector.load %arg5[%c6, %c0_73, %c0_74] : memref<12x32x32xbf16, #tpu.memory_space<vmem>>, vector<1x32x32xbf16>
    %345 = vector.shape_cast %344 : vector<1x32x32xbf16> to vector<32x32xbf16>
    %cst_75 = arith.constant dense<0.000000e+00> : vector<8x32xf32>
    %346 = tpu.matmul %343, %345, %cst_75 {dimension_numbers = #tpu.dot_dimension_numbers<[1], [0], [0], [1], [0, 0, 1, 1], [], []>} : vector<8x32xbf16>, vector<32x32xbf16>, vector<8x32xf32> -> vector<8x32xf32>
    %c6_76 = arith.constant 6 : index
    %c0_77 = arith.constant 0 : index
    %347 = vector.load %arg7[%c6_76, %c0_77] : memref<13x128xf32, #tpu.memory_space<vmem>>, vector<1x32xf32>
    %348 = vector.broadcast %347 : vector<1x32xf32> to vector<8x32xf32>
    %349 = arith.addf %346, %348 : vector<8x32xf32>
    %350 = math.tanh %349 : vector<8x32xf32>
    %351 = arith.truncf %350 : vector<8x32xf32> to vector<8x32xbf16>
    %c7 = arith.constant 7 : index
    %c0_78 = arith.constant 0 : index
    %c0_79 = arith.constant 0 : index
    %352 = vector.load %arg5[%c7, %c0_78, %c0_79] : memref<12x32x32xbf16, #tpu.memory_space<vmem>>, vector<1x32x32xbf16>
    %353 = vector.shape_cast %352 : vector<1x32x32xbf16> to vector<32x32xbf16>
    %cst_80 = arith.constant dense<0.000000e+00> : vector<8x32xf32>
    %354 = tpu.matmul %351, %353, %cst_80 {dimension_numbers = #tpu.dot_dimension_numbers<[1], [0], [0], [1], [0, 0, 1, 1], [], []>} : vector<8x32xbf16>, vector<32x32xbf16>, vector<8x32xf32> -> vector<8x32xf32>
    %c7_81 = arith.constant 7 : index
    %c0_82 = arith.constant 0 : index
    %355 = vector.load %arg7[%c7_81, %c0_82] : memref<13x128xf32, #tpu.memory_space<vmem>>, vector<1x32xf32>
    %356 = vector.broadcast %355 : vector<1x32xf32> to vector<8x32xf32>
    %357 = arith.addf %354, %356 : vector<8x32xf32>
    %358 = math.tanh %357 : vector<8x32xf32>
    %359 = arith.truncf %358 : vector<8x32xf32> to vector<8x32xbf16>
    %c8 = arith.constant 8 : index
    %c0_83 = arith.constant 0 : index
    %c0_84 = arith.constant 0 : index
    %360 = vector.load %arg5[%c8, %c0_83, %c0_84] : memref<12x32x32xbf16, #tpu.memory_space<vmem>>, vector<1x32x32xbf16>
    %361 = vector.shape_cast %360 : vector<1x32x32xbf16> to vector<32x32xbf16>
    %cst_85 = arith.constant dense<0.000000e+00> : vector<8x32xf32>
    %362 = tpu.matmul %359, %361, %cst_85 {dimension_numbers = #tpu.dot_dimension_numbers<[1], [0], [0], [1], [0, 0, 1, 1], [], []>} : vector<8x32xbf16>, vector<32x32xbf16>, vector<8x32xf32> -> vector<8x32xf32>
    %c8_86 = arith.constant 8 : index
    %c0_87 = arith.constant 0 : index
    %363 = vector.load %arg7[%c8_86, %c0_87] : memref<13x128xf32, #tpu.memory_space<vmem>>, vector<1x32xf32>
    %364 = vector.broadcast %363 : vector<1x32xf32> to vector<8x32xf32>
    %365 = arith.addf %362, %364 : vector<8x32xf32>
    %366 = math.tanh %365 : vector<8x32xf32>
    %367 = arith.truncf %366 : vector<8x32xf32> to vector<8x32xbf16>
    %c9 = arith.constant 9 : index
    %c0_88 = arith.constant 0 : index
    %c0_89 = arith.constant 0 : index
    %368 = vector.load %arg5[%c9, %c0_88, %c0_89] : memref<12x32x32xbf16, #tpu.memory_space<vmem>>, vector<1x32x32xbf16>
    %369 = vector.shape_cast %368 : vector<1x32x32xbf16> to vector<32x32xbf16>
    %cst_90 = arith.constant dense<0.000000e+00> : vector<8x32xf32>
    %370 = tpu.matmul %367, %369, %cst_90 {dimension_numbers = #tpu.dot_dimension_numbers<[1], [0], [0], [1], [0, 0, 1, 1], [], []>} : vector<8x32xbf16>, vector<32x32xbf16>, vector<8x32xf32> -> vector<8x32xf32>
    %c9_91 = arith.constant 9 : index
    %c0_92 = arith.constant 0 : index
    %371 = vector.load %arg7[%c9_91, %c0_92] : memref<13x128xf32, #tpu.memory_space<vmem>>, vector<1x32xf32>
    %372 = vector.broadcast %371 : vector<1x32xf32> to vector<8x32xf32>
    %373 = arith.addf %370, %372 : vector<8x32xf32>
    %374 = math.tanh %373 : vector<8x32xf32>
    %375 = arith.truncf %374 : vector<8x32xf32> to vector<8x32xbf16>
    %c10 = arith.constant 10 : index
    %c0_93 = arith.constant 0 : index
    %c0_94 = arith.constant 0 : index
    %376 = vector.load %arg5[%c10, %c0_93, %c0_94] : memref<12x32x32xbf16, #tpu.memory_space<vmem>>, vector<1x32x32xbf16>
    %377 = vector.shape_cast %376 : vector<1x32x32xbf16> to vector<32x32xbf16>
    %cst_95 = arith.constant dense<0.000000e+00> : vector<8x32xf32>
    %378 = tpu.matmul %375, %377, %cst_95 {dimension_numbers = #tpu.dot_dimension_numbers<[1], [0], [0], [1], [0, 0, 1, 1], [], []>} : vector<8x32xbf16>, vector<32x32xbf16>, vector<8x32xf32> -> vector<8x32xf32>
    %c10_96 = arith.constant 10 : index
    %c0_97 = arith.constant 0 : index
    %379 = vector.load %arg7[%c10_96, %c0_97] : memref<13x128xf32, #tpu.memory_space<vmem>>, vector<1x32xf32>
    %380 = vector.broadcast %379 : vector<1x32xf32> to vector<8x32xf32>
    %381 = arith.addf %378, %380 : vector<8x32xf32>
    %382 = math.tanh %381 : vector<8x32xf32>
    %383 = arith.truncf %382 : vector<8x32xf32> to vector<8x32xbf16>
    %c11 = arith.constant 11 : index
    %c0_98 = arith.constant 0 : index
    %c0_99 = arith.constant 0 : index
    %384 = vector.load %arg5[%c11, %c0_98, %c0_99] : memref<12x32x32xbf16, #tpu.memory_space<vmem>>, vector<1x32x32xbf16>
    %385 = vector.shape_cast %384 : vector<1x32x32xbf16> to vector<32x32xbf16>
    %cst_100 = arith.constant dense<0.000000e+00> : vector<8x32xf32>
    %386 = tpu.matmul %383, %385, %cst_100 {dimension_numbers = #tpu.dot_dimension_numbers<[1], [0], [0], [1], [0, 0, 1, 1], [], []>} : vector<8x32xbf16>, vector<32x32xbf16>, vector<8x32xf32> -> vector<8x32xf32>
    %c11_101 = arith.constant 11 : index
    %c0_102 = arith.constant 0 : index
    %387 = vector.load %arg7[%c11_101, %c0_102] : memref<13x128xf32, #tpu.memory_space<vmem>>, vector<1x32xf32>
    %388 = vector.broadcast %387 : vector<1x32xf32> to vector<8x32xf32>
    %389 = arith.addf %386, %388 : vector<8x32xf32>
    %390 = math.tanh %389 : vector<8x32xf32>
    %c0_103 = arith.constant 0 : index
    %c0_104 = arith.constant 0 : index
    %391 = vector.load %arg6[%c0_103, %c0_104] : memref<1x32xf32, #tpu.memory_space<vmem>>, vector<1x32xf32>
    %392 = vector.broadcast %391 : vector<1x32xf32> to vector<8x32xf32>
    %393 = arith.mulf %390, %392 : vector<8x32xf32>
    %cst_105 = arith.constant dense<0.000000e+00> : vector<8xf32>
    %394 = vector.multi_reduction <add>, %393, %cst_105 [1] : vector<8x32xf32> to vector<8xf32>
    %395 = vector.shape_cast %394 : vector<8xf32> to vector<8x1xf32>
    %396 = vector.broadcast %5 : vector<1x1xf32> to vector<8x1xf32>
    %397 = arith.addf %395, %396 : vector<8x1xf32>
    %398 = arith.negf %397 : vector<8x1xf32>
    %399 = math.exp %398 : vector<8x1xf32>
    %cst_106 = arith.constant 1.000000e+00 : f32
    %400 = vector.broadcast %cst_106 : f32 to vector<8x1xf32>
    %401 = arith.addf %400, %399 : vector<8x1xf32>
    %402 = arith.divf %400, %401 : vector<8x1xf32>
    %c0_107 = arith.constant 0 : index
    %c0_108 = arith.constant 0 : index
    %c0_109 = arith.constant 0 : index
    %403 = vector.load %arg8[%c0_107, %c0_108, %c0_109] : memref<1x8x1xf32, #tpu.memory_space<vmem>>, vector<1x8x1xf32>
    %404 = vector.shape_cast %403 : vector<1x8x1xf32> to vector<8x1xf32>
    %405 = vector.shape_cast %402 : vector<8x1xf32> to vector<1x8x1xf32>
    tpu.vector_store %arg8[%c0_107, %c0_108, %c0_109], %405 {strides = array<i32>} : memref<1x8x1xf32, #tpu.memory_space<vmem>>, vector<1x8x1xf32>,
    return
  }
  func.func @transform_0(%arg0: i32) -> (i32, i32, i32) {
    %c0_i32 = arith.constant 0 : i32
    %c0_i32_0 = arith.constant 0 : i32
    %c0_i32_1 = arith.constant 0 : i32
    return %arg0, %c0_i32, %c0_i32_0 : i32, i32, i32
  }
  func.func @transform_1(%arg0: i32) -> (i32, i32) {
    %c0_i32 = arith.constant 0 : i32
    %c0_i32_0 = arith.constant 0 : i32
    %c0_i32_1 = arith.constant 0 : i32
    return %c0_i32, %c0_i32_0 : i32, i32
  }
  func.func @transform_2(%arg0: i32) -> (i32, i32) {
    %c0_i32 = arith.constant 0 : i32
    %c0_i32_0 = arith.constant 0 : i32
    %c0_i32_1 = arith.constant 0 : i32
    return %c0_i32, %c0_i32_0 : i32, i32
  }
  func.func @transform_3(%arg0: i32) -> (i32, i32) {
    %c0_i32 = arith.constant 0 : i32
    %c0_i32_0 = arith.constant 0 : i32
    %c0_i32_1 = arith.constant 0 : i32
    return %c0_i32, %c0_i32_0 : i32, i32
  }
  func.func @transform_4(%arg0: i32) -> (i32, i32, i32) {
    %c0_i32 = arith.constant 0 : i32
    %c0_i32_0 = arith.constant 0 : i32
    %c0_i32_1 = arith.constant 0 : i32
    %c0_i32_2 = arith.constant 0 : i32
    return %c0_i32, %c0_i32_0, %c0_i32_1 : i32, i32, i32
  }
  func.func @transform_5(%arg0: i32) -> (i32, i32) {
    %c0_i32 = arith.constant 0 : i32
    %c0_i32_0 = arith.constant 0 : i32
    %c0_i32_1 = arith.constant 0 : i32
    return %c0_i32, %c0_i32_0 : i32, i32
  }
  func.func @transform_6(%arg0: i32) -> (i32, i32) {
    %c0_i32 = arith.constant 0 : i32
    %c0_i32_0 = arith.constant 0 : i32
    %c0_i32_1 = arith.constant 0 : i32
    return %c0_i32, %c0_i32_0 : i32, i32
  }
  func.func @transform_7(%arg0: i32) -> (i32, i32, i32) {
    %c0_i32 = arith.constant 0 : i32
    %c0_i32_0 = arith.constant 0 : i32
    %c0_i32_1 = arith.constant 0 : i32
    return %arg0, %c0_i32, %c0_i32_0 : i32, i32, i32
  }
}

</mosaic_0001>

<llo_original>
// kernel: lstm_layered_extractors.1
$region0: #{lstm_layered_extractors.1}
  #allocation0 [shape = 'u32[]', space=smem, size = 0x4, offset = 0x4, fixed_abs, tag = 'smem constant byte address 0x4 - core index']
  #allocation1 [shape = 'u32[144,128]{1,0:T(1,128)}', space=vmem, size = 0x12000, scoped, tag = 'internal scratch']
  %s0 = inlined_call_operand.vmem [shape: bf16[1,64,29], index: 0, kind: input, shape index: {}]
  %s1 = inlined_call_operand.vmem [shape: bf16[29,32], index: 1, kind: input, shape index: {}]
  %s2 = inlined_call_operand.vmem [shape: bf16[32,128], index: 2, kind: input, shape index: {}]
  %s3 = inlined_call_operand.vmem [shape: bf16[32,128], index: 3, kind: input, shape index: {}]
  %s4 = inlined_call_operand.vmem [shape: bf16[12,32,32], index: 4, kind: input, shape index: {}]
  %s5 = inlined_call_operand.vmem [shape: f32[1,32], index: 5, kind: input, shape index: {}]
  %s6 = inlined_call_operand.vmem [shape: f32[13,128], index: 6, kind: input, shape index: {}]
  %s7 = inlined_call_operand.vmem [shape: f32[1,8,1], index: 7, kind: output, shape index: {}]
  %s8 = sld [smem:[#allocation0]]
  $region38: #{lstm_layered_extractors.1} parent=0
    _
  %s10 = ssub.s32 1, %s8
  %s11 = scalar_select 0, %s10, %s8
  // Predicated region
  $region2: #{lstm_layered_extractors.1} parent=0 // pred_check
    _
  $region3: #{lstm_layered_extractors.1} parent=0 // pred_check_branch
    %13 = sbr.rel (0) target = $region5
  $region4: #{lstm_layered_extractors.1} parent=0 // pred_region
    _
  $region5: #{lstm_layered_extractors.1} parent=0 // pred_fallthru
    _
  // Predicated region
  $region6: #{lstm_layered_extractors.1} parent=0 // pred_check
    _
  $region7: #{lstm_layered_extractors.1} parent=0 // pred_check_branch
    %15 = sbr.rel (0) target = $region9
  $region8: #{lstm_layered_extractors.1} parent=0 // pred_region
    _
  $region9: #{lstm_layered_extractors.1} parent=0 // pred_fallthru
    _
  // Predicated region
  $region10: #{lstm_layered_extractors.1} parent=0 // pred_check
    _
  $region11: #{lstm_layered_extractors.1} parent=0 // pred_check_branch
    %17 = sbr.rel (0) target = $region13
  $region12: #{lstm_layered_extractors.1} parent=0 // pred_region
    _
  $region13: #{lstm_layered_extractors.1} parent=0 // pred_fallthru
    _
  // Predicated region
  $region14: #{lstm_layered_extractors.1} parent=0 // pred_check
    _
  $region15: #{lstm_layered_extractors.1} parent=0 // pred_check_branch
    %19 = sbr.rel (0) target = $region17
  $region16: #{lstm_layered_extractors.1} parent=0 // pred_region
    _
  $region17: #{lstm_layered_extractors.1} parent=0 // pred_fallthru
    _
  // Predicated region
  $region18: #{lstm_layered_extractors.1} parent=0 // pred_check
    _
  $region19: #{lstm_layered_extractors.1} parent=0 // pred_check_branch
    %21 = sbr.rel (0) target = $region21
  $region20: #{lstm_layered_extractors.1} parent=0 // pred_region
    _
  $region21: #{lstm_layered_extractors.1} parent=0 // pred_fallthru
    _
  // Predicated region
  $region22: #{lstm_layered_extractors.1} parent=0 // pred_check
    _
  $region23: #{lstm_layered_extractors.1} parent=0 // pred_check_branch
    %23 = sbr.rel (0) target = $region25
  $region24: #{lstm_layered_extractors.1} parent=0 // pred_region
    _
  $region25: #{lstm_layered_extractors.1} parent=0 // pred_fallthru
    _
  // Predicated region
  $region26: #{lstm_layered_extractors.1} parent=0 // pred_check
    _
  $region27: #{lstm_layered_extractors.1} parent=0 // pred_check_branch
    %25 = sbr.rel (0) target = $region29
  $region28: #{lstm_layered_extractors.1} parent=0 // pred_region
    _
  $region29: #{lstm_layered_extractors.1} parent=0 // pred_fallthru
    _
  %v27 = vld [vmem:[%s6] sm:$0x1]
  %v28 = vld [vmem:[%s6 + $0x1] sm:$0x1]
  %v29 = vld [vmem:[%s6 + $0xc] sm:$0x1]
  %v30 = vld [vmem:[%s0] sm:$0xf]
  %v31 = vld [vmem:[%s0 + $0x4] sm:$0xf]
  %v32 = vld [vmem:[%s0 + $0x8] sm:$0xf]
  %v33 = vld [vmem:[%s0 + $0xc] sm:$0xf]
  %v34 = vld [vmem:[%s0 + $0x10] sm:$0xf]
  %v35 = vld [vmem:[%s0 + $0x14] sm:$0xf]
  %v36 = vld [vmem:[%s0 + $0x18] sm:$0xf]
  %v37 = vld [vmem:[%s0 + $0x1c] sm:$0xf]
  %v38 = vld [vmem:[%s1] sm:$0xf]
  %v39 = vld [vmem:[%s1 + $0x4] sm:$0xf]
  %v40 = vld [vmem:[%s1 + $0x8] sm:$0xf]
  %v41 = vld [vmem:[%s1 + $0xc] sm:$0x7]
  %v50 = vunpack.c.l.b16 %v30
  %v51 = vunpack.c.l.b16 %v31
  %v52 = vunpack.c.l.b16 %v32
  %v53 = vunpack.c.l.b16 %v33
  %v54 = vunpack.c.l.b16 %v34
  %v55 = vunpack.c.l.b16 %v35
  %v56 = vunpack.c.l.b16 %v36
  %v57 = vunpack.c.l.b16 %v37
  %v58 = vpack.c.b16 %v51, %v50
  %v59 = vpack.c.b16 %v53, %v52
  %v60 = vpack.c.b16 %v55, %v54
  %v61 = vpack.c.b16 %v57, %v56
  %v66 = vunpack.c.l.b16 %v38
  %v67 = vunpack.c.l.b16 %v39
  %v68 = vunpack.c.l.b16 %v40
  %v69 = vunpack.c.l.b16 %v41
  %v70 = vpack.c.b16 %v67, %v66
  %v71 = vpack.c.b16 %v69, %v68
  %vm73 = vcmask 236544
  %v75 = vsel %vm73, %v58, 0
  %v78 = vsel %vm73, %v59, 0
  %v81 = vsel %vm73, %v60, 0
  %v84 = vsel %vm73, %v61, 0
  %vm86 = vcmask 1045504
  %vm87 = vcmask 1046528
  %v88 = vsel %vm86, 4294967295, 65535
  %v89 = vsel %vm87, %v88, 0
  %v91 = vand.u32 %v71, %v89
  %93 = vmatprep.subr.bf16.mxu0 0
  %94 = vmatpush1.bf16.msra.mxu0 %v70
  %95 = vmatprep.subr.bf16.mxu0 0
  %96 = vmatpush1.bf16.msra.mxu0 %v91
  %97 = vmatprep.subr.bf16.mxu0 0
  %98 = vmatpush1.bf16.msra.mxu0 0
  %99 = vmatprep.subr.bf16.mxu0 0
  %100 = vmatpush1.bf16.msra.mxu0 0
  %101 = vmatprep.subr.bf16.mxu0 0
  %102 = vmatpush1.bf16.msra.mxu0 0
  %103 = vmatprep.subr.bf16.mxu0 0
  %104 = vmatpush1.bf16.msra.mxu0 0
  %105 = vmatprep.subr.bf16.mxu0 0
  %106 = vmatpush1.bf16.msra.mxu0 0
  %107 = vmatprep.subr.bf16.mxu0 0
  %108 = vmatpush1.bf16.msra.mxu0 0
  %109 = vmatprep.subr.bf16.mxu0 0
  %110 = vmatpush1.bf16.msra.mxu0 0
  %111 = vmatprep.subr.bf16.mxu0 0
  %112 = vmatpush1.bf16.msra.mxu0 0
  %113 = vmatprep.subr.bf16.mxu0 0
  %114 = vmatpush1.bf16.msra.mxu0 0
  %115 = vmatprep.subr.bf16.mxu0 0
  %116 = vmatpush1.bf16.msra.mxu0 0
  %117 = vmatprep.subr.bf16.mxu0 0
  %118 = vmatpush1.bf16.msra.mxu0 0
  %119 = vmatprep.subr.bf16.mxu0 0
  %120 = vmatpush1.bf16.msra.mxu0 0
  %121 = vmatprep.subr.bf16.mxu0 0
  %122 = vmatpush1.bf16.msra.mxu0 0
  %123 = vmatprep.subr.bf16.mxu0 0
  %124 = vmatpush1.bf16.msra.mxu0 0
  %125 = vmatprep.mubr.bf16.mxu0 0
  %126 = vmatmul.mubr.bf16.gmra.mrb[0].mxu0 %v75
  %v127 = vpop.f32.mrb[0].mxu0
  %v128 = vadd.f32 0.0, %v127
  %v129 = vpop.f32.mrb[0].mxu0
  %v130 = vpop.f32.mrb[0].mxu0
  %v131 = vadd.f32 0.0, %v130
  %v132 = vpop.f32.mrb[0].mxu0
  %133 = vmatprep.mubr.bf16.mxu0 0
  %134 = vmatmul.mubr.bf16.gmra.mrb[0].mxu0 %v78
  %v135 = vpop.f32.mrb[0].mxu0
  %v136 = vadd.f32 0.0, %v135
  %v137 = vpop.f32.mrb[0].mxu0
  %v138 = vpop.f32.mrb[0].mxu0
  %v139 = vadd.f32 0.0, %v138
  %v140 = vpop.f32.mrb[0].mxu0
  %141 = vmatprep.mubr.bf16.mxu0 0
  %142 = vmatmul.mubr.bf16.gmra.mrb[0].mxu0 %v81
  %v143 = vpop.f32.mrb[0].mxu0
  %v144 = vadd.f32 0.0, %v143
  %v145 = vpop.f32.mrb[0].mxu0
  %v146 = vpop.f32.mrb[0].mxu0
  %v147 = vadd.f32 0.0, %v146
  %v148 = vpop.f32.mrb[0].mxu0
  %149 = vmatprep.mubr.bf16.mxu0 0
  %150 = vmatmul.mubr.bf16.gmra.mrb[0].mxu0 %v84
  %v151 = vpop.f32.mrb[0].mxu0
  %v152 = vadd.f32 0.0, %v151
  %v153 = vpop.f32.mrb[0].mxu0
  %v154 = vpop.f32.mrb[0].mxu0
  %v155 = vadd.f32 0.0, %v154
  %v156 = vpop.f32.mrb[0].mxu0
  %157 = vdwg.mxu0
  %v158 = vmax.f32 %v128, 0.0
  %v159 = vmax.f32 %v131, 0.0
  %v160 = vmax.f32 %v136, 0.0
  %v161 = vmax.f32 %v139, 0.0
  %v162 = vmax.f32 %v144, 0.0
  %v163 = vmax.f32 %v147, 0.0
  %v164 = vmax.f32 %v152, 0.0
  %v165 = vmax.f32 %v155, 0.0
  %v166 = vpack.c.bf16 %v159, %v158
  %v167 = vpack.c.bf16 %v161, %v160
  %v168 = vpack.c.bf16 %v163, %v162
  %v169 = vpack.c.bf16 %v165, %v164
  %v170 = vld [vmem:[%s4] sm:$0xf]
  %v171 = vld [vmem:[%s4 + $0x4] sm:$0xf]
  %v172 = vld [vmem:[%s4 + $0x8] sm:$0xf]
  %v173 = vld [vmem:[%s4 + $0xc] sm:$0xf]
  %v174 = vlaneseq
  %v175 = vshrl.u32 %v174, 7
  %v176 = vsub.s32 0, %v175
  %v177 = vrot.slane %v27, %v176
  %v182 = vunpack.c.l.b16 %v170
  %v183 = vunpack.c.l.b16 %v171
  %v184 = vunpack.c.l.b16 %v172
  %v185 = vunpack.c.l.b16 %v173
  %v186 = vpack.c.b16 %v183, %v182
  %v187 = vpack.c.b16 %v185, %v184
  %vm190 = vcmask 261120
  %v192 = vsel %vm190, %v166, 0
  %v195 = vsel %vm190, %v167, 0
  %v198 = vsel %vm190, %v168, 0
  %v201 = vsel %vm190, %v169, 0
  %203 = vmatprep.subr.bf16.mxu0 0
  %204 = vmatpush1.bf16.msra.mxu0 %v186
  %205 = vmatprep.subr.bf16.mxu0 0
  %206 = vmatpush1.bf16.msra.mxu0 %v187
  %207 = vmatprep.subr.bf16.mxu0 0
  %208 = vmatpush1.bf16.msra.mxu0 0
  %209 = vmatprep.subr.bf16.mxu0 0
  %210 = vmatpush1.bf16.msra.mxu0 0
  %211 = vmatprep.subr.bf16.mxu0 0
  %212 = vmatpush1.bf16.msra.mxu0 0
  %213 = vmatprep.subr.bf16.mxu0 0
  %214 = vmatpush1.bf16.msra.mxu0 0
  %215 = vmatprep.subr.bf16.mxu0 0
  %216 = vmatpush1.bf16.msra.mxu0 0
  %217 = vmatprep.subr.bf16.mxu0 0
  %218 = vmatpush1.bf16.msra.mxu0 0
  %219 = vmatprep.subr.bf16.mxu0 0
  %220 = vmatpush1.bf16.msra.mxu0 0
  %221 = vmatprep.subr.bf16.mxu0 0
  %222 = vmatpush1.bf16.msra.mxu0 0
  %223 = vmatprep.subr.bf16.mxu0 0
  %224 = vmatpush1.bf16.msra.mxu0 0
  %225 = vmatprep.subr.bf16.mxu0 0
  %226 = vmatpush1.bf16.msra.mxu0 0
  %227 = vmatprep.subr.bf16.mxu0 0
  %228 = vmatpush1.bf16.msra.mxu0 0
  %229 = vmatprep.subr.bf16.mxu0 0
  %230 = vmatpush1.bf16.msra.mxu0 0
  %231 = vmatprep.subr.bf16.mxu0 0
  %232 = vmatpush1.bf16.msra.mxu0 0
  %233 = vmatprep.subr.bf16.mxu0 0
  %234 = vmatpush1.bf16.msra.mxu0 0
  %235 = vmatprep.mubr.bf16.mxu0 0
  %236 = vmatmul.mubr.bf16.gmra.mrb[0].mxu0 %v192
  %v237 = vpop.f32.mrb[0].mxu0
  %v238 = vadd.f32 %v177, %v237
  %v239 = vpop.f32.mrb[0].mxu0
  %v240 = vpop.f32.mrb[0].mxu0
  %v241 = vadd.f32 %v177, %v240
  %v242 = vpop.f32.mrb[0].mxu0
  %243 = vmatprep.mubr.bf16.mxu0 0
  %244 = vmatmul.mubr.bf16.gmra.mrb[0].mxu0 %v195
  %v245 = vpop.f32.mrb[0].mxu0
  %v246 = vadd.f32 %v177, %v245
  %v247 = vpop.f32.mrb[0].mxu0
  %v248 = vpop.f32.mrb[0].mxu0
  %v249 = vadd.f32 %v177, %v248
  %v250 = vpop.f32.mrb[0].mxu0
  %251 = vmatprep.mubr.bf16.mxu0 0
  %252 = vmatmul.mubr.bf16.gmra.mrb[0].mxu0 %v198
  %v253 = vpop.f32.mrb[0].mxu0
  %v254 = vadd.f32 %v177, %v253
  %v255 = vpop.f32.mrb[0].mxu0
  %v256 = vpop.f32.mrb[0].mxu0
  %v257 = vadd.f32 %v177, %v256
  %v258 = vpop.f32.mrb[0].mxu0
  %259 = vmatprep.mubr.bf16.mxu0 0
  %260 = vmatmul.mubr.bf16.gmra.mrb[0].mxu0 %v201
  %v261 = vpop.f32.mrb[0].mxu0
  %v262 = vadd.f32 %v177, %v261
  %v263 = vpop.f32.mrb[0].mxu0
  %v264 = vpop.f32.mrb[0].mxu0
  %v265 = vadd.f32 %v177, %v264
  %v266 = vpop.f32.mrb[0].mxu0
  %267 = vdwg.mxu0
  %v268 = vsel %vm190, %v238, -inf
  %269 = vmax.xlane.f32.xlu0 %v268
  %v270 = vpop.xlane.xlu0 %269
  %v271 = vsel %vm190, %v241, -inf
  %272 = vmax.xlane.f32.xlu0 %v271
  %v273 = vpop.xlane.xlu0 %272
  %v274 = vsel %vm190, %v246, -inf
  %275 = vmax.xlane.f32.xlu0 %v274
  %v276 = vpop.xlane.xlu0 %275
  %v277 = vsel %vm190, %v249, -inf
  %278 = vmax.xlane.f32.xlu0 %v277
  %v279 = vpop.xlane.xlu0 %278
  %v280 = vsel %vm190, %v254, -inf
  %281 = vmax.xlane.f32.xlu0 %v280
  %v282 = vpop.xlane.xlu0 %281
  %v283 = vsel %vm190, %v257, -inf
  %284 = vmax.xlane.f32.xlu0 %v283
  %v285 = vpop.xlane.xlu0 %284
  %v286 = vsel %vm190, %v262, -inf
  %287 = vmax.xlane.f32.xlu0 %v286
  %v288 = vpop.xlane.xlu0 %287
  %v289 = vsel %vm190, %v265, -inf
  %290 = vmax.xlane.f32.xlu0 %v289
  %v291 = vpop.xlane.xlu0 %290
  %v292 = vsub.f32 %v238, %v270
  %v293 = vsub.f32 %v241, %v273
  %v294 = vsub.f32 %v246, %v276
  %v295 = vsub.f32 %v249, %v279
  %v296 = vsub.f32 %v254, %v282
  %v297 = vsub.f32 %v257, %v285
  %v298 = vsub.f32 %v262, %v288
  %v299 = vsub.f32 %v265, %v291
  %v300 = vmul.f32 %v292, 1.442695
  %v301 = vpow.pop %v300
  %v302 = vmul.f32 %v293, 1.442695
  %v303 = vpow.pop %v302
  %v304 = vmul.f32 %v294, 1.442695
  %v305 = vpow.pop %v304
  %v306 = vmul.f32 %v295, 1.442695
  %v307 = vpow.pop %v306
  %v308 = vmul.f32 %v296, 1.442695
  %v309 = vpow.pop %v308
  %v310 = vmul.f32 %v297, 1.442695
  %v311 = vpow.pop %v310
  %v312 = vmul.f32 %v298, 1.442695
  %v313 = vpow.pop %v312
  %v314 = vmul.f32 %v299, 1.442695
  %v315 = vpow.pop %v314
  %v316 = vsel %vm190, %v301, 0.0
  %317 = vadd.xlane.f32.xlu0 %v316
  %v318 = vpop.xlane.xlu0 %317
  %v319 = vsel %vm190, %v303, 0.0
  %320 = vadd.xlane.f32.xlu0 %v319
  %v321 = vpop.xlane.xlu0 %320
  %v322 = vsel %vm190, %v305, 0.0
  %323 = vadd.xlane.f32.xlu0 %v322
  %v324 = vpop.xlane.xlu0 %323
  %v325 = vsel %vm190, %v307, 0.0
  %326 = vadd.xlane.f32.xlu0 %v325
  %v327 = vpop.xlane.xlu0 %326
  %v328 = vsel %vm190, %v309, 0.0
  %329 = vadd.xlane.f32.xlu0 %v328
  %v330 = vpop.xlane.xlu0 %329
  %v331 = vsel %vm190, %v311, 0.0
  %332 = vadd.xlane.f32.xlu0 %v331
  %v333 = vpop.xlane.xlu0 %332
  %v334 = vsel %vm190, %v313, 0.0
  %335 = vadd.xlane.f32.xlu0 %v334
  %v336 = vpop.xlane.xlu0 %335
  %v337 = vsel %vm190, %v315, 0.0
  %338 = vadd.xlane.f32.xlu0 %v337
  %v339 = vpop.xlane.xlu0 %338
  %v340 = vrcp.pop %v318
  %v341 = vrcp.pop %v321
  %v342 = vrcp.pop %v324
  %v343 = vrcp.pop %v327
  %v344 = vrcp.pop %v330
  %v345 = vrcp.pop %v333
  %v346 = vrcp.pop %v336
  %v347 = vrcp.pop %v339
  %v348 = vmul.f32 %v301, %v340
  %v349 = vmul.f32 %v303, %v341
  %v350 = vmul.f32 %v305, %v342
  %v351 = vmul.f32 %v307, %v343
  %v352 = vmul.f32 %v309, %v344
  %v353 = vmul.f32 %v311, %v345
  %v354 = vmul.f32 %v313, %v346
  %v355 = vmul.f32 %v315, %v347
  %v356 = vmul.f32 %v158, %v348
  %v357 = vmul.f32 %v159, %v349
  %v358 = vmul.f32 %v160, %v350
  %v359 = vmul.f32 %v161, %v351
  %v360 = vmul.f32 %v162, %v352
  %v361 = vmul.f32 %v163, %v353
  %v362 = vmul.f32 %v164, %v354
  %v363 = vmul.f32 %v165, %v355
  %v364 = vpack.c.bf16 %v357, %v356
  %v365 = vpack.c.bf16 %v359, %v358
  %v366 = vpack.c.bf16 %v361, %v360
  %v367 = vpack.c.bf16 %v363, %v362
  %v368 = vld [vmem:[%s2] sm:$0xf]
  %v369 = vld [vmem:[%s2 + $0x4] sm:$0xf]
  %v370 = vld [vmem:[%s2 + $0x8] sm:$0xf]
  %v371 = vld [vmem:[%s2 + $0xc] sm:$0xf]
  %v372 = vlaneseq
  %v373 = vshrl.u32 %v372, 7
  %v374 = vsub.s32 0, %v373
  %v375 = vrot.slane %v28, %v374
  %v380 = vunpack.c.l.b16 %v368
  %v381 = vunpack.c.l.b16 %v369
  %v382 = vunpack.c.l.b16 %v370
  %v383 = vunpack.c.l.b16 %v371
  %v384 = vpack.c.b16 %v381, %v380
  %v385 = vpack.c.b16 %v383, %v382
  %v389 = vsel %vm190, %v364, 0
  %v392 = vsel %vm190, %v365, 0
  %v395 = vsel %vm190, %v366, 0
  %v398 = vsel %vm190, %v367, 0
  %400 = vmatprep.subr.bf16.mxu0 0
  %401 = vmatpush1.bf16.msra.mxu0 %v384
  %402 = vmatprep.subr.bf16.mxu0 0
  %403 = vmatpush1.bf16.msra.mxu0 %v385
  %404 = vmatprep.subr.bf16.mxu0 0
  %405 = vmatpush1.bf16.msra.mxu0 0
  %406 = vmatprep.subr.bf16.mxu0 0
  %407 = vmatpush1.bf16.msra.mxu0 0
  %408 = vmatprep.subr.bf16.mxu0 0
  %409 = vmatpush1.bf16.msra.mxu0 0
  %410 = vmatprep.subr.bf16.mxu0 0
  %411 = vmatpush1.bf16.msra.mxu0 0
  %412 = vmatprep.subr.bf16.mxu0 0
  %413 = vmatpush1.bf16.msra.mxu0 0
  %414 = vmatprep.subr.bf16.mxu0 0
  %415 = vmatpush1.bf16.msra.mxu0 0
  %416 = vmatprep.subr.bf16.mxu0 0
  %417 = vmatpush1.bf16.msra.mxu0 0
  %418 = vmatprep.subr.bf16.mxu0 0
  %419 = vmatpush1.bf16.msra.mxu0 0
  %420 = vmatprep.subr.bf16.mxu0 0
  %421 = vmatpush1.bf16.msra.mxu0 0
  %422 = vmatprep.subr.bf16.mxu0 0
  %423 = vmatpush1.bf16.msra.mxu0 0
  %424 = vmatprep.subr.bf16.mxu0 0
  %425 = vmatpush1.bf16.msra.mxu0 0
  %426 = vmatprep.subr.bf16.mxu0 0
  %427 = vmatpush1.bf16.msra.mxu0 0
  %428 = vmatprep.subr.bf16.mxu0 0
  %429 = vmatpush1.bf16.msra.mxu0 0
  %430 = vmatprep.subr.bf16.mxu0 0
  %431 = vmatpush1.bf16.msra.mxu0 0
  %432 = vmatprep.mubr.bf16.mxu0 0
  %433 = vmatmul.mubr.bf16.gmra.mrb[0].mxu0 %v389
  %v434 = vpop.f32.mrb[0].mxu0
  %v435 = vadd.f32 %v375, %v434
  %v436 = vpop.f32.mrb[0].mxu0
  %v437 = vpop.f32.mrb[0].mxu0
  %v438 = vadd.f32 %v375, %v437
  %v439 = vpop.f32.mrb[0].mxu0
  %440 = vmatprep.mubr.bf16.mxu0 0
  %441 = vmatmul.mubr.bf16.gmra.mrb[0].mxu0 %v392
  %v442 = vpop.f32.mrb[0].mxu0
  %v443 = vadd.f32 %v375, %v442
  %v444 = vpop.f32.mrb[0].mxu0
  %v445 = vpop.f32.mrb[0].mxu0
  %v446 = vadd.f32 %v375, %v445
  %v447 = vpop.f32.mrb[0].mxu0
  %448 = vmatprep.mubr.bf16.mxu0 0
  %449 = vmatmul.mubr.bf16.gmra.mrb[0].mxu0 %v395
  %v450 = vpop.f32.mrb[0].mxu0
  %v451 = vadd.f32 %v375, %v450
  %v452 = vpop.f32.mrb[0].mxu0
  %v453 = vpop.f32.mrb[0].mxu0
  %v454 = vadd.f32 %v375, %v453
  %v455 = vpop.f32.mrb[0].mxu0
  %456 = vmatprep.mubr.bf16.mxu0 0
  %457 = vmatmul.mubr.bf16.gmra.mrb[0].mxu0 %v398
  %v458 = vpop.f32.mrb[0].mxu0
  %v459 = vadd.f32 %v375, %v458
  %v460 = vpop.f32.mrb[0].mxu0
  %v461 = vpop.f32.mrb[0].mxu0
  %v462 = vadd.f32 %v375, %v461
  %v463 = vpop.f32.mrb[0].mxu0
  %464 = vdwg.mxu0
  %v465 = vld [vmem:[%s3] sm:$0xf]
  %v466 = vld [vmem:[%s3 + $0x4] sm:$0xf]
  %v467 = vld [vmem:[%s3 + $0x8] sm:$0xf]
  %v468 = vld [vmem:[%s3 + $0xc] sm:$0xf]
  %v469 = vlaneseq
  %v470 = vand.u32 %v469, 127
  %vm471 = vcmp.lt.s32.totalorder %v470, 96
  %v476 = vunpack.c.l.b16 %v465
  %v477 = vunpack.c.l.b16 %v466
  %v478 = vunpack.c.l.b16 %v467
  %v479 = vunpack.c.l.b16 %v468
  %v480 = vpack.c.b16 %v477, %v476
  %v481 = vpack.c.b16 %v479, %v478
  %v485 = vsel %vm190, 0, 0
  %487 = vmatprep.subr.bf16.mxu0 0
  %488 = vmatpush1.bf16.msra.mxu0 %v480
  %489 = vmatprep.subr.bf16.mxu0 0
  %490 = vmatpush1.bf16.msra.mxu0 %v481
  %491 = vmatprep.subr.bf16.mxu0 0
  %492 = vmatpush1.bf16.msra.mxu0 0
  %493 = vmatprep.subr.bf16.mxu0 0
  %494 = vmatpush1.bf16.msra.mxu0 0
  %495 = vmatprep.subr.bf16.mxu0 0
  %496 = vmatpush1.bf16.msra.mxu0 0
  %497 = vmatprep.subr.bf16.mxu0 0
  %498 = vmatpush1.bf16.msra.mxu0 0
  %499 = vmatprep.subr.bf16.mxu0 0
  %500 = vmatpush1.bf16.msra.mxu0 0
  %501 = vmatprep.subr.bf16.mxu0 0
  %502 = vmatpush1.bf16.msra.mxu0 0
  %503 = vmatprep.subr.bf16.mxu0 0
  %504 = vmatpush1.bf16.msra.mxu0 0
  %505 = vmatprep.subr.bf16.mxu0 0
  %506 = vmatpush1.bf16.msra.mxu0 0
  %507 = vmatprep.subr.bf16.mxu0 0
  %508 = vmatpush1.bf16.msra.mxu0 0
  %509 = vmatprep.subr.bf16.mxu0 0
  %510 = vmatpush1.bf16.msra.mxu0 0
  %511 = vmatprep.subr.bf16.mxu0 0
  %512 = vmatpush1.bf16.msra.mxu0 0
  %513 = vmatprep.subr.bf16.mxu0 0
  %514 = vmatpush1.bf16.msra.mxu0 0
  %515 = vmatprep.subr.bf16.mxu0 0
  %516 = vmatpush1.bf16.msra.mxu0 0
  %517 = vmatprep.subr.bf16.mxu0 0
  %518 = vmatpush1.bf16.msra.mxu0 0
  %519 = vmatprep.mubr.bf16.mxu0 0
  %520 = vmatmul.mubr.bf16.gmra.mrb[0].mxu0 %v485
  %v521 = vpop.f32.mrb[0].mxu0
  %v522 = vadd.f32 0.0, %v521
  %v523 = vpop.f32.mrb[0].mxu0
  %v524 = vpop.f32.mrb[0].mxu0
  %v525 = vpop.f32.mrb[0].mxu0
  %526 = vdwg.mxu0
  %v527 = vadd.f32 %v435, %v522
  %v528 = vxor.u32 %v527, 2147483648
  %v529 = vmul.f32 %v528, 1.442695
  %v530 = vpow.pop %v529
  %v531 = vadd.f32 %v530, 1.0
  %v532 = vrcp.pop %v531
  %v533 = vmul.f32 1.0, %v532
  %v534 = vtanh.pop %v527
  %v535 = vsel %vm471, %v533, %v534
  %v536 = vmul.f32 %v535, 0.0
  %538 = vrot.lane.b32.xlu0 %v535, 32
  %v539 = vpop.permute.xlu0 %538
  %v541 = vmul.f32 %v535, %v539
  %543 = vrot.lane.b32.xlu0 %v541, 32
  %v544 = vpop.permute.xlu0 %543
  %v546 = vadd.f32 %v536, %v544
  %v547 = vtanh.pop %v546
  %549 = vrot.lane.b32.xlu0 %v547, 32
  %v550 = vpop.permute.xlu0 %549
  %v552 = vmul.f32 %v535, %v550
  %v553 = vmul.f32 %v552, %v177
  %555 = vrot.lane.b32.xlu0 %v553, 64
  %v556 = vpop.permute.xlu0 %555
  %v558 = vsel %vm190, %v556, 0.0
  %559 = vadd.xlane.f32.xlu0 %v558
  %v560 = vpop.xlane.xlu0 %559
  %v561 = vadd.f32 %v560, %v177
  %v562 = vpack.c.bf16 %v552, %v552
  %564 = vrot.lane.b32.xlu0 %v562, 64
  %v565 = vpop.permute.xlu0 %564
  %v567 = vsel %vm190, %v565, 0
  %569 = vmatprep.subr.bf16.mxu0 0
  %570 = vmatpush1.bf16.msra.mxu0 %v480
  %571 = vmatprep.subr.bf16.mxu0 0
  %572 = vmatpush1.bf16.msra.mxu0 %v481
  %573 = vmatprep.subr.bf16.mxu0 0
  %574 = vmatpush1.bf16.msra.mxu0 0
  %575 = vmatprep.subr.bf16.mxu0 0
  %576 = vmatpush1.bf16.msra.mxu0 0
  %577 = vmatprep.subr.bf16.mxu0 0
  %578 = vmatpush1.bf16.msra.mxu0 0
  %579 = vmatprep.subr.bf16.mxu0 0
  %580 = vmatpush1.bf16.msra.mxu0 0
  %581 = vmatprep.subr.bf16.mxu0 0
  %582 = vmatpush1.bf16.msra.mxu0 0
  %583 = vmatprep.subr.bf16.mxu0 0
  %584 = vmatpush1.bf16.msra.mxu0 0
  %585 = vmatprep.subr.bf16.mxu0 0
  %586 = vmatpush1.bf16.msra.mxu0 0
  %587 = vmatprep.subr.bf16.mxu0 0
  %588 = vmatpush1.bf16.msra.mxu0 0
  %589 = vmatprep.subr.bf16.mxu0 0
  %590 = vmatpush1.bf16.msra.mxu0 0
  %591 = vmatprep.subr.bf16.mxu0 0
  %592 = vmatpush1.bf16.msra.mxu0 0
  %593 = vmatprep.subr.bf16.mxu0 0
  %594 = vmatpush1.bf16.msra.mxu0 0
  %595 = vmatprep.subr.bf16.mxu0 0
  %596 = vmatpush1.bf16.msra.mxu0 0
  %597 = vmatprep.subr.bf16.mxu0 0
  %598 = vmatpush1.bf16.msra.mxu0 0
  %599 = vmatprep.subr.bf16.mxu0 0
  %600 = vmatpush1.bf16.msra.mxu0 0
  %601 = vmatprep.mubr.bf16.mxu0 0
  %602 = vmatmul.mubr.bf16.gmra.mrb[0].mxu0 %v567
  %v603 = vpop.f32.mrb[0].mxu0
  %v604 = vadd.f32 0.0, %v603
  %v605 = vpop.f32.mrb[0].mxu0
  %v606 = vpop.f32.mrb[0].mxu0
  %v607 = vpop.f32.mrb[0].mxu0
  %608 = vdwg.mxu0
  %v609 = vadd.f32 %v438, %v604
  %v610 = vxor.u32 %v609, 2147483648
  %v611 = vmul.f32 %v610, 1.442695
  %v612 = vpow.pop %v611
  %v613 = vadd.f32 %v612, 1.0
  %v614 = vrcp.pop %v613
  %v615 = vmul.f32 1.0, %v614
  %v616 = vtanh.pop %v609
  %v617 = vsel %vm471, %v615, %v616
  %v618 = vmul.f32 %v617, %v546
  %620 = vrot.lane.b32.xlu0 %v617, 32
  %v621 = vpop.permute.xlu0 %620
  %v623 = vmul.f32 %v617, %v621
  %625 = vrot.lane.b32.xlu0 %v623, 32
  %v626 = vpop.permute.xlu0 %625
  %v628 = vadd.f32 %v618, %v626
  %v629 = vtanh.pop %v628
  %631 = vrot.lane.b32.xlu0 %v629, 32
  %v632 = vpop.permute.xlu0 %631
  %v634 = vmul.f32 %v617, %v632
  %v635 = vmul.f32 %v634, %v177
  %637 = vrot.lane.b32.xlu0 %v635, 64
  %v638 = vpop.permute.xlu0 %637
  %v640 = vsel %vm190, %v638, 0.0
  %641 = vadd.xlane.f32.xlu0 %v640
  %v642 = vpop.xlane.xlu0 %641
  %v643 = vadd.f32 %v642, %v177
  %v644 = vpack.c.bf16 %v634, %v634
  %646 = vrot.lane.b32.xlu0 %v644, 64
  %v647 = vpop.permute.xlu0 %646
  %v649 = vsel %vm190, %v647, 0
  %651 = vmatprep.subr.bf16.mxu0 0
  %652 = vmatpush1.bf16.msra.mxu0 %v480
  %653 = vmatprep.subr.bf16.mxu0 0
  %654 = vmatpush1.bf16.msra.mxu0 %v481
  %655 = vmatprep.subr.bf16.mxu0 0
  %656 = vmatpush1.bf16.msra.mxu0 0
  %657 = vmatprep.subr.bf16.mxu0 0
  %658 = vmatpush1.bf16.msra.mxu0 0
  %659 = vmatprep.subr.bf16.mxu0 0
  %660 = vmatpush1.bf16.msra.mxu0 0
  %661 = vmatprep.subr.bf16.mxu0 0
  %662 = vmatpush1.bf16.msra.mxu0 0
  %663 = vmatprep.subr.bf16.mxu0 0
  %664 = vmatpush1.bf16.msra.mxu0 0
  %665 = vmatprep.subr.bf16.mxu0 0
  %666 = vmatpush1.bf16.msra.mxu0 0
  %667 = vmatprep.subr.bf16.mxu0 0
  %668 = vmatpush1.bf16.msra.mxu0 0
  %669 = vmatprep.subr.bf16.mxu0 0
  %670 = vmatpush1.bf16.msra.mxu0 0
  %671 = vmatprep.subr.bf16.mxu0 0
  %672 = vmatpush1.bf16.msra.mxu0 0
  %673 = vmatprep.subr.bf16.mxu0 0
  %674 = vmatpush1.bf16.msra.mxu0 0
  %675 = vmatprep.subr.bf16.mxu0 0
  %676 = vmatpush1.bf16.msra.mxu0 0
  %677 = vmatprep.subr.bf16.mxu0 0
  %678 = vmatpush1.bf16.msra.mxu0 0
  %679 = vmatprep.subr.bf16.mxu0 0
  %680 = vmatpush1.bf16.msra.mxu0 0
  %681 = vmatprep.subr.bf16.mxu0 0
  %682 = vmatpush1.bf16.msra.mxu0 0
  %683 = vmatprep.mubr.bf16.mxu0 0
  %684 = vmatmul.mubr.bf16.gmra.mrb[0].mxu0 %v649
  %v685 = vpop.f32.mrb[0].mxu0
  %v686 = vadd.f32 0.0, %v685
  %v687 = vpop.f32.mrb[0].mxu0
  %v688 = vpop.f32.mrb[0].mxu0
  %v689 = vpop.f32.mrb[0].mxu0
  %690 = vdwg.mxu0
  %v691 = vadd.f32 %v443, %v686
  %v692 = vxor.u32 %v691, 2147483648
  %v693 = vmul.f32 %v692, 1.442695
  %v694 = vpow.pop %v693
  %v695 = vadd.f32 %v694, 1.0
  %v696 = vrcp.pop %v695
  %v697 = vmul.f32 1.0, %v696
  %v698 = vtanh.pop %v691
  %v699 = vsel %vm471, %v697, %v698
  %v700 = vmul.f32 %v699, %v628
  %702 = vrot.lane.b32.xlu0 %v699, 32
  %v703 = vpop.permute.xlu0 %702
  %v705 = vmul.f32 %v699, %v703
  %707 = vrot.lane.b32.xlu0 %v705, 32
  %v708 = vpop.permute.xlu0 %707
  %v710 = vadd.f32 %v700, %v708
  %v711 = vtanh.pop %v710
  %713 = vrot.lane.b32.xlu0 %v711, 32
  %v714 = vpop.permute.xlu0 %713
  %v716 = vmul.f32 %v699, %v714
  %v717 = vmul.f32 %v716, %v177
  %719 = vrot.lane.b32.xlu0 %v717, 64
  %v720 = vpop.permute.xlu0 %719
  %v722 = vsel %vm190, %v720, 0.0
  %723 = vadd.xlane.f32.xlu0 %v722
  %v724 = vpop.xlane.xlu0 %723
  %v725 = vadd.f32 %v724, %v177
  %v726 = vpack.c.bf16 %v716, %v716
  %728 = vrot.lane.b32.xlu0 %v726, 64
  %v729 = vpop.permute.xlu0 %728
  %v731 = vsel %vm190, %v729, 0
  %733 = vmatprep.subr.bf16.mxu0 0
  %734 = vmatpush1.bf16.msra.mxu0 %v480
  %735 = vmatprep.subr.bf16.mxu0 0
  %736 = vmatpush1.bf16.msra.mxu0 %v481
  %737 = vmatprep.subr.bf16.mxu0 0
  %738 = vmatpush1.bf16.msra.mxu0 0
  %739 = vmatprep.subr.bf16.mxu0 0
  %740 = vmatpush1.bf16.msra.mxu0 0
  %741 = vmatprep.subr.bf16.mxu0 0
  %742 = vmatpush1.bf16.msra.mxu0 0
  %743 = vmatprep.subr.bf16.mxu0 0
  %744 = vmatpush1.bf16.msra.mxu0 0
  %745 = vmatprep.subr.bf16.mxu0 0
  %746 = vmatpush1.bf16.msra.mxu0 0
  %747 = vmatprep.subr.bf16.mxu0 0
  %748 = vmatpush1.bf16.msra.mxu0 0
  %749 = vmatprep.subr.bf16.mxu0 0
  %750 = vmatpush1.bf16.msra.mxu0 0
  %751 = vmatprep.subr.bf16.mxu0 0
  %752 = vmatpush1.bf16.msra.mxu0 0
  %753 = vmatprep.subr.bf16.mxu0 0
  %754 = vmatpush1.bf16.msra.mxu0 0
  %755 = vmatprep.subr.bf16.mxu0 0
  %756 = vmatpush1.bf16.msra.mxu0 0
  %757 = vmatprep.subr.bf16.mxu0 0
  %758 = vmatpush1.bf16.msra.mxu0 0
  %759 = vmatprep.subr.bf16.mxu0 0
  %760 = vmatpush1.bf16.msra.mxu0 0
  %761 = vmatprep.subr.bf16.mxu0 0
  %762 = vmatpush1.bf16.msra.mxu0 0
  %763 = vmatprep.subr.bf16.mxu0 0
  %764 = vmatpush1.bf16.msra.mxu0 0
  %765 = vmatprep.mubr.bf16.mxu0 0
  %766 = vmatmul.mubr.bf16.gmra.mrb[0].mxu0 %v731
  %v767 = vpop.f32.mrb[0].mxu0
  %v768 = vadd.f32 0.0, %v767
  %v769 = vpop.f32.mrb[0].mxu0
  %v770 = vpop.f32.mrb[0].mxu0
  %v771 = vpop.f32.mrb[0].mxu0
  %772 = vdwg.mxu0
  %v773 = vadd.f32 %v446, %v768
  %v774 = vxor.u32 %v773, 2147483648
  %v775 = vmul.f32 %v774, 1.442695
  %v776 = vpow.pop %v775
  %v777 = vadd.f32 %v776, 1.0
  %v778 = vrcp.pop %v777
  %v779 = vmul.f32 1.0, %v778
  %v780 = vtanh.pop %v773
  %v781 = vsel %vm471, %v779, %v780
  %v782 = vmul.f32 %v781, %v710
  %784 = vrot.lane.b32.xlu0 %v781, 32
  %v785 = vpop.permute.xlu0 %784
  %v787 = vmul.f32 %v781, %v785
  %789 = vrot.lane.b32.xlu0 %v787, 32
  %v790 = vpop.permute.xlu0 %789
  %v792 = vadd.f32 %v782, %v790
  %v793 = vtanh.pop %v792
  %795 = vrot.lane.b32.xlu0 %v793, 32
  %v796 = vpop.permute.xlu0 %795
  %v798 = vmul.f32 %v781, %v796
  %v799 = vmul.f32 %v798, %v177
  %801 = vrot.lane.b32.xlu0 %v799, 64
  %v802 = vpop.permute.xlu0 %801
  %v804 = vsel %vm190, %v802, 0.0
  %805 = vadd.xlane.f32.xlu0 %v804
  %v806 = vpop.xlane.xlu0 %805
  %v807 = vadd.f32 %v806, %v177
  %v808 = vpack.c.bf16 %v798, %v798
  %810 = vrot.lane.b32.xlu0 %v808, 64
  %v811 = vpop.permute.xlu0 %810
  %v813 = vsel %vm190, %v811, 0
  %815 = vmatprep.subr.bf16.mxu0 0
  %816 = vmatpush1.bf16.msra.mxu0 %v480
  %817 = vmatprep.subr.bf16.mxu0 0
  %818 = vmatpush1.bf16.msra.mxu0 %v481
  %819 = vmatprep.subr.bf16.mxu0 0
  %820 = vmatpush1.bf16.msra.mxu0 0
  %821 = vmatprep.subr.bf16.mxu0 0
  %822 = vmatpush1.bf16.msra.mxu0 0
  %823 = vmatprep.subr.bf16.mxu0 0
  %824 = vmatpush1.bf16.msra.mxu0 0
  %825 = vmatprep.subr.bf16.mxu0 0
  %826 = vmatpush1.bf16.msra.mxu0 0
  %827 = vmatprep.subr.bf16.mxu0 0
  %828 = vmatpush1.bf16.msra.mxu0 0
  %829 = vmatprep.subr.bf16.mxu0 0
  %830 = vmatpush1.bf16.msra.mxu0 0
  %831 = vmatprep.subr.bf16.mxu0 0
  %832 = vmatpush1.bf16.msra.mxu0 0
  %833 = vmatprep.subr.bf16.mxu0 0
  %834 = vmatpush1.bf16.msra.mxu0 0
  %835 = vmatprep.subr.bf16.mxu0 0
  %836 = vmatpush1.bf16.msra.mxu0 0
  %837 = vmatprep.subr.bf16.mxu0 0
  %838 = vmatpush1.bf16.msra.mxu0 0
  %839 = vmatprep.subr.bf16.mxu0 0
  %840 = vmatpush1.bf16.msra.mxu0 0
  %841 = vmatprep.subr.bf16.mxu0 0
  %842 = vmatpush1.bf16.msra.mxu0 0
  %843 = vmatprep.subr.bf16.mxu0 0
  %844 = vmatpush1.bf16.msra.mxu0 0
  %845 = vmatprep.subr.bf16.mxu0 0
  %846 = vmatpush1.bf16.msra.mxu0 0
  %847 = vmatprep.mubr.bf16.mxu0 0
  %848 = vmatmul.mubr.bf16.gmra.mrb[0].mxu0 %v813
  %v849 = vpop.f32.mrb[0].mxu0
  %v850 = vadd.f32 0.0, %v849
  %v851 = vpop.f32.mrb[0].mxu0
  %v852 = vpop.f32.mrb[0].mxu0
  %v853 = vpop.f32.mrb[0].mxu0
  %854 = vdwg.mxu0
  %v855 = vadd.f32 %v451, %v850
  %v856 = vxor.u32 %v855, 2147483648
  %v857 = vmul.f32 %v856, 1.442695
  %v858 = vpow.pop %v857
  %v859 = vadd.f32 %v858, 1.0
  %v860 = vrcp.pop %v859
  %v861 = vmul.f32 1.0, %v860
  %v862 = vtanh.pop %v855
  %v863 = vsel %vm471, %v861, %v862
  %v864 = vmul.f32 %v863, %v792
  %866 = vrot.lane.b32.xlu0 %v863, 32
  %v867 = vpop.permute.xlu0 %866
  %v869 = vmul.f32 %v863, %v867
  %871 = vrot.lane.b32.xlu0 %v869, 32
  %v872 = vpop.permute.xlu0 %871
  %v874 = vadd.f32 %v864, %v872
  %v875 = vtanh.pop %v874
  %877 = vrot.lane.b32.xlu0 %v875, 32
  %v878 = vpop.permute.xlu0 %877
  %v880 = vmul.f32 %v863, %v878
  %v881 = vmul.f32 %v880, %v177
  %883 = vrot.lane.b32.xlu0 %v881, 64
  %v884 = vpop.permute.xlu0 %883
  %v886 = vsel %vm190, %v884, 0.0
  %887 = vadd.xlane.f32.xlu0 %v886
  %v888 = vpop.xlane.xlu0 %887
  %v889 = vadd.f32 %v888, %v177
  %v890 = vpack.c.bf16 %v880, %v880
  %892 = vrot.lane.b32.xlu0 %v890, 64
  %v893 = vpop.permute.xlu0 %892
  %v895 = vsel %vm190, %v893, 0
  %897 = vmatprep.subr.bf16.mxu0 0
  %898 = vmatpush1.bf16.msra.mxu0 %v480
  %899 = vmatprep.subr.bf16.mxu0 0
  %900 = vmatpush1.bf16.msra.mxu0 %v481
  %901 = vmatprep.subr.bf16.mxu0 0
  %902 = vmatpush1.bf16.msra.mxu0 0
  %903 = vmatprep.subr.bf16.mxu0 0
  %904 = vmatpush1.bf16.msra.mxu0 0
  %905 = vmatprep.subr.bf16.mxu0 0
  %906 = vmatpush1.bf16.msra.mxu0 0
  %907 = vmatprep.subr.bf16.mxu0 0
  %908 = vmatpush1.bf16.msra.mxu0 0
  %909 = vmatprep.subr.bf16.mxu0 0
  %910 = vmatpush1.bf16.msra.mxu0 0
  %911 = vmatprep.subr.bf16.mxu0 0
  %912 = vmatpush1.bf16.msra.mxu0 0
  %913 = vmatprep.subr.bf16.mxu0 0
  %914 = vmatpush1.bf16.msra.mxu0 0
  %915 = vmatprep.subr.bf16.mxu0 0
  %916 = vmatpush1.bf16.msra.mxu0 0
  %917 = vmatprep.subr.bf16.mxu0 0
  %918 = vmatpush1.bf16.msra.mxu0 0
  %919 = vmatprep.subr.bf16.mxu0 0
  %920 = vmatpush1.bf16.msra.mxu0 0
  %921 = vmatprep.subr.bf16.mxu0 0
  %922 = vmatpush1.bf16.msra.mxu0 0
  %923 = vmatprep.subr.bf16.mxu0 0
  %924 = vmatpush1.bf16.msra.mxu0 0
  %925 = vmatprep.subr.bf16.mxu0 0
  %926 = vmatpush1.bf16.msra.mxu0 0
  %927 = vmatprep.subr.bf16.mxu0 0
  %928 = vmatpush1.bf16.msra.mxu0 0
  %929 = vmatprep.mubr.bf16.mxu0 0
  %930 = vmatmul.mubr.bf16.gmra.mrb[0].mxu0 %v895
  %v931 = vpop.f32.mrb[0].mxu0
  %v932 = vadd.f32 0.0, %v931
  %v933 = vpop.f32.mrb[0].mxu0
  %v934 = vpop.f32.mrb[0].mxu0
  %v935 = vpop.f32.mrb[0].mxu0
  %936 = vdwg.mxu0
  %v937 = vadd.f32 %v454, %v932
  %v938 = vxor.u32 %v937, 2147483648
  %v939 = vmul.f32 %v938, 1.442695
  %v940 = vpow.pop %v939
  %v941 = vadd.f32 %v940, 1.0
  %v942 = vrcp.pop %v941
  %v943 = vmul.f32 1.0, %v942
  %v944 = vtanh.pop %v937
  %v945 = vsel %vm471, %v943, %v944
  %v946 = vmul.f32 %v945, %v874
  %948 = vrot.lane.b32.xlu0 %v945, 32
  %v949 = vpop.permute.xlu0 %948
  %v951 = vmul.f32 %v945, %v949
  %953 = vrot.lane.b32.xlu0 %v951, 32
  %v954 = vpop.permute.xlu0 %953
  %v956 = vadd.f32 %v946, %v954
  %v957 = vtanh.pop %v956
  %959 = vrot.lane.b32.xlu0 %v957, 32
  %v960 = vpop.permute.xlu0 %959
  %v962 = vmul.f32 %v945, %v960
  %v963 = vmul.f32 %v962, %v177
  %965 = vrot.lane.b32.xlu0 %v963, 64
  %v966 = vpop.permute.xlu0 %965
  %v968 = vsel %vm190, %v966, 0.0
  %969 = vadd.xlane.f32.xlu0 %v968
  %v970 = vpop.xlane.xlu0 %969
  %v971 = vadd.f32 %v970, %v177
  %v972 = vpack.c.bf16 %v962, %v962
  %974 = vrot.lane.b32.xlu0 %v972, 64
  %v975 = vpop.permute.xlu0 %974
  %v977 = vsel %vm190, %v975, 0
  %979 = vmatprep.subr.bf16.mxu0 0
  %980 = vmatpush1.bf16.msra.mxu0 %v480
  %981 = vmatprep.subr.bf16.mxu0 0
  %982 = vmatpush1.bf16.msra.mxu0 %v481
  %983 = vmatprep.subr.bf16.mxu0 0
  %984 = vmatpush1.bf16.msra.mxu0 0
  %985 = vmatprep.subr.bf16.mxu0 0
  %986 = vmatpush1.bf16.msra.mxu0 0
  %987 = vmatprep.subr.bf16.mxu0 0
  %988 = vmatpush1.bf16.msra.mxu0 0
  %989 = vmatprep.subr.bf16.mxu0 0
  %990 = vmatpush1.bf16.msra.mxu0 0
  %991 = vmatprep.subr.bf16.mxu0 0
  %992 = vmatpush1.bf16.msra.mxu0 0
  %993 = vmatprep.subr.bf16.mxu0 0
  %994 = vmatpush1.bf16.msra.mxu0 0
  %995 = vmatprep.subr.bf16.mxu0 0
  %996 = vmatpush1.bf16.msra.mxu0 0
  %997 = vmatprep.subr.bf16.mxu0 0
  %998 = vmatpush1.bf16.msra.mxu0 0
  %999 = vmatprep.subr.bf16.mxu0 0
  %1000 = vmatpush1.bf16.msra.mxu0 0
  %1001 = vmatprep.subr.bf16.mxu0 0
  %1002 = vmatpush1.bf16.msra.mxu0 0
  %1003 = vmatprep.subr.bf16.mxu0 0
  %1004 = vmatpush1.bf16.msra.mxu0 0
  %1005 = vmatprep.subr.bf16.mxu0 0
  %1006 = vmatpush1.bf16.msra.mxu0 0
  %1007 = vmatprep.subr.bf16.mxu0 0
  %1008 = vmatpush1.bf16.msra.mxu0 0
  %1009 = vmatprep.subr.bf16.mxu0 0
  %1010 = vmatpush1.bf16.msra.mxu0 0
  %1011 = vmatprep.mubr.bf16.mxu0 0
  %1012 = vmatmul.mubr.bf16.gmra.mrb[0].mxu0 %v977
  %v1013 = vpop.f32.mrb[0].mxu0
  %v1014 = vadd.f32 0.0, %v1013
  %v1015 = vpop.f32.mrb[0].mxu0
  %v1016 = vpop.f32.mrb[0].mxu0
  %v1017 = vpop.f32.mrb[0].mxu0
  %1018 = vdwg.mxu0
  %v1019 = vadd.f32 %v459, %v1014
  %v1020 = vxor.u32 %v1019, 2147483648
  %v1021 = vmul.f32 %v1020, 1.442695
  %v1022 = vpow.pop %v1021
  %v1023 = vadd.f32 %v1022, 1.0
  %v1024 = vrcp.pop %v1023
  %v1025 = vmul.f32 1.0, %v1024
  %v1026 = vtanh.pop %v1019
  %v1027 = vsel %vm471, %v1025, %v1026
  %v1028 = vmul.f32 %v1027, %v956
  %1030 = vrot.lane.b32.xlu0 %v1027, 32
  %v1031 = vpop.permute.xlu0 %1030
  %v1033 = vmul.f32 %v1027, %v1031
  %1035 = vrot.lane.b32.xlu0 %v1033, 32
  %v1036 = vpop.permute.xlu0 %1035
  %v1038 = vadd.f32 %v1028, %v1036
  %v1039 = vtanh.pop %v1038
  %1041 = vrot.lane.b32.xlu0 %v1039, 32
  %v1042 = vpop.permute.xlu0 %1041
  %v1044 = vmul.f32 %v1027, %v1042
  %v1045 = vmul.f32 %v1044, %v177
  %1047 = vrot.lane.b32.xlu0 %v1045, 64
  %v1048 = vpop.permute.xlu0 %1047
  %v1050 = vsel %vm190, %v1048, 0.0
  %1051 = vadd.xlane.f32.xlu0 %v1050
  %v1052 = vpop.xlane.xlu0 %1051
  %v1053 = vadd.f32 %v1052, %v177
  %v1054 = vpack.c.bf16 %v1044, %v1044
  %1056 = vrot.lane.b32.xlu0 %v1054, 64
  %v1057 = vpop.permute.xlu0 %1056
  %v1059 = vsel %vm190, %v1057, 0
  %1061 = vmatprep.subr.bf16.mxu0 0
  %1062 = vmatpush1.bf16.msra.mxu0 %v480
  %1063 = vmatprep.subr.bf16.mxu0 0
  %1064 = vmatpush1.bf16.msra.mxu0 %v481
  %1065 = vmatprep.subr.bf16.mxu0 0
  %1066 = vmatpush1.bf16.msra.mxu0 0
  %1067 = vmatprep.subr.bf16.mxu0 0
  %1068 = vmatpush1.bf16.msra.mxu0 0
  %1069 = vmatprep.subr.bf16.mxu0 0
  %1070 = vmatpush1.bf16.msra.mxu0 0
  %1071 = vmatprep.subr.bf16.mxu0 0
  %1072 = vmatpush1.bf16.msra.mxu0 0
  %1073 = vmatprep.subr.bf16.mxu0 0
  %1074 = vmatpush1.bf16.msra.mxu0 0
  %1075 = vmatprep.subr.bf16.mxu0 0
  %1076 = vmatpush1.bf16.msra.mxu0 0
  %1077 = vmatprep.subr.bf16.mxu0 0
  %1078 = vmatpush1.bf16.msra.mxu0 0
  %1079 = vmatprep.subr.bf16.mxu0 0
  %1080 = vmatpush1.bf16.msra.mxu0 0
  %1081 = vmatprep.subr.bf16.mxu0 0
  %1082 = vmatpush1.bf16.msra.mxu0 0
  %1083 = vmatprep.subr.bf16.mxu0 0
  %1084 = vmatpush1.bf16.msra.mxu0 0
  %1085 = vmatprep.subr.bf16.mxu0 0
  %1086 = vmatpush1.bf16.msra.mxu0 0
  %1087 = vmatprep.subr.bf16.mxu0 0
  %1088 = vmatpush1.bf16.msra.mxu0 0
  %1089 = vmatprep.subr.bf16.mxu0 0
  %1090 = vmatpush1.bf16.msra.mxu0 0
  %1091 = vmatprep.subr.bf16.mxu0 0
  %1092 = vmatpush1.bf16.msra.mxu0 0
  %1093 = vmatprep.mubr.bf16.mxu0 0
  %1094 = vmatmul.mubr.bf16.gmra.mrb[0].mxu0 %v1059
  %v1095 = vpop.f32.mrb[0].mxu0
  %v1096 = vadd.f32 0.0, %v1095
  %v1097 = vpop.f32.mrb[0].mxu0
  %v1098 = vpop.f32.mrb[0].mxu0
  %v1099 = vpop.f32.mrb[0].mxu0
  %1100 = vdwg.mxu0
  %v1101 = vadd.f32 %v462, %v1096
  %v1102 = vxor.u32 %v1101, 2147483648
  %v1103 = vmul.f32 %v1102, 1.442695
  %v1104 = vpow.pop %v1103
  %v1105 = vadd.f32 %v1104, 1.0
  %v1106 = vrcp.pop %v1105
  %v1107 = vmul.f32 1.0, %v1106
  %v1108 = vtanh.pop %v1101
  %v1109 = vsel %vm471, %v1107, %v1108
  %v1110 = vmul.f32 %v1109, %v1038
  %1112 = vrot.lane.b32.xlu0 %v1109, 32
  %v1113 = vpop.permute.xlu0 %1112
  %v1115 = vmul.f32 %v1109, %v1113
  %1117 = vrot.lane.b32.xlu0 %v1115, 32
  %v1118 = vpop.permute.xlu0 %1117
  %v1120 = vadd.f32 %v1110, %v1118
  %v1121 = vtanh.pop %v1120
  %1123 = vrot.lane.b32.xlu0 %v1121, 32
  %v1124 = vpop.permute.xlu0 %1123
  %v1126 = vmul.f32 %v1109, %v1124
  %v1127 = vmul.f32 %v1126, %v177
  %1129 = vrot.lane.b32.xlu0 %v1127, 64
  %v1130 = vpop.permute.xlu0 %1129
  %v1132 = vsel %vm190, %v1130, 0.0
  %1133 = vadd.xlane.f32.xlu0 %v1132
  %v1134 = vpop.xlane.xlu0 %1133
  %v1135 = vadd.f32 %v1134, %v177
  %v1136 = vmax.f32 %v561, %v643
  %v1137 = vmax.f32 %v1136, %v725
  %v1138 = vmax.f32 %v1137, %v807
  %v1139 = vmax.f32 %v1138, %v889
  %v1140 = vmax.f32 %v1139, %v971
  %v1141 = vmax.f32 %v1140, %v1053
  %v1142 = vmax.f32 %v1141, %v1135
  %v1143 = vsub.f32 %v561, %v1142
  %v1144 = vmul.f32 %v1143, 1.442695
  %v1145 = vpow.pop %v1144
  %v1146 = vsub.f32 %v643, %v1142
  %v1147 = vmul.f32 %v1146, 1.442695
  %v1148 = vpow.pop %v1147
  %v1149 = vsub.f32 %v725, %v1142
  %v1150 = vmul.f32 %v1149, 1.442695
  %v1151 = vpow.pop %v1150
  %v1152 = vsub.f32 %v807, %v1142
  %v1153 = vmul.f32 %v1152, 1.442695
  %v1154 = vpow.pop %v1153
  %v1155 = vsub.f32 %v889, %v1142
  %v1156 = vmul.f32 %v1155, 1.442695
  %v1157 = vpow.pop %v1156
  %v1158 = vsub.f32 %v971, %v1142
  %v1159 = vmul.f32 %v1158, 1.442695
  %v1160 = vpow.pop %v1159
  %v1161 = vsub.f32 %v1053, %v1142
  %v1162 = vmul.f32 %v1161, 1.442695
  %v1163 = vpow.pop %v1162
  %v1164 = vsub.f32 %v1135, %v1142
  %v1165 = vmul.f32 %v1164, 1.442695
  %v1166 = vpow.pop %v1165
  %v1167 = vadd.f32 %v1145, %v1148
  %v1168 = vadd.f32 %v1167, %v1151
  %v1169 = vadd.f32 %v1168, %v1154
  %v1170 = vadd.f32 %v1169, %v1157
  %v1171 = vadd.f32 %v1170, %v1160
  %v1172 = vadd.f32 %v1171, %v1163
  %v1173 = vadd.f32 %v1172, %v1166
  %v1174 = vrcp.pop %v1173
  %1176 = vset.pattern.permute.xlu0 96
  %1177 = vperm.xlu0 %1176, %v1145
  %v1178 = vpop.permute.xlu0 %1177
  %v1180 = vmul.f32 %v1178, %v552
  %1182 = vset.pattern.permute.xlu0 96
  %1183 = vperm.xlu0 %1182, %v1148
  %v1184 = vpop.permute.xlu0 %1183
  %v1186 = vmul.f32 %v1184, %v634
  %v1187 = vadd.f32 %v1180, %v1186
  %1189 = vset.pattern.permute.xlu0 96
  %1190 = vperm.xlu0 %1189, %v1151
  %v1191 = vpop.permute.xlu0 %1190
  %v1193 = vmul.f32 %v1191, %v716
  %v1194 = vadd.f32 %v1187, %v1193
  %1196 = vset.pattern.permute.xlu0 96
  %1197 = vperm.xlu0 %1196, %v1154
  %v1198 = vpop.permute.xlu0 %1197
  %v1200 = vmul.f32 %v1198, %v798
  %v1201 = vadd.f32 %v1194, %v1200
  %1203 = vset.pattern.permute.xlu0 96
  %1204 = vperm.xlu0 %1203, %v1157
  %v1205 = vpop.permute.xlu0 %1204
  %v1207 = vmul.f32 %v1205, %v880
  %v1208 = vadd.f32 %v1201, %v1207
  %1210 = vset.pattern.permute.xlu0 96
  %1211 = vperm.xlu0 %1210, %v1160
  %v1212 = vpop.permute.xlu0 %1211
  %v1214 = vmul.f32 %v1212, %v962
  %v1215 = vadd.f32 %v1208, %v1214
  %1217 = vset.pattern.permute.xlu0 96
  %1218 = vperm.xlu0 %1217, %v1163
  %v1219 = vpop.permute.xlu0 %1218
  %v1221 = vmul.f32 %v1219, %v1044
  %v1222 = vadd.f32 %v1215, %v1221
  %1224 = vset.pattern.permute.xlu0 96
  %1225 = vperm.xlu0 %1224, %v1166
  %v1226 = vpop.permute.xlu0 %1225
  %v1228 = vmul.f32 %v1226, %v1126
  %v1229 = vadd.f32 %v1222, %v1228
  %1231 = vset.pattern.permute.xlu0 96
  %1232 = vperm.xlu0 %1231, %v1174
  %v1233 = vpop.permute.xlu0 %1232
  %v1235 = vmul.f32 %v1229, %v1233
  %v1236 = vpack.c.bf16 %v1235, %v1235
  %s1237 = scalar_lea.vmem %s4, 16
  %v1238 = vld [vmem:[%s1237] sm:$0xf]
  %v1239 = vld [vmem:[%s1237 + $0x4] sm:$0xf]
  %v1240 = vld [vmem:[%s1237 + $0x8] sm:$0xf]
  %v1241 = vld [vmem:[%s1237 + $0xc] sm:$0xf]
  %1243 = vrot.lane.b32.xlu0 %v1236, 64
  %v1244 = vpop.permute.xlu0 %1243
  %v1249 = vunpack.c.l.b16 %v1238
  %v1250 = vunpack.c.l.b16 %v1239
  %v1251 = vunpack.c.l.b16 %v1240
  %v1252 = vunpack.c.l.b16 %v1241
  %v1253 = vpack.c.b16 %v1250, %v1249
  %v1254 = vpack.c.b16 %v1252, %v1251
  %1258 = vrot.lane.b32.xlu0 %v177, 96
  %v1259 = vpop.permute.xlu0 %1258
  %v1262 = vsel %vm190, %v1244, 0
  %1264 = vmatprep.subr.bf16.mxu0 0
  %1265 = vmatpush1.bf16.msra.mxu0 %v1253
  %1266 = vmatprep.subr.bf16.mxu0 0
  %1267 = vmatpush1.bf16.msra.mxu0 %v1254
  %1268 = vmatprep.subr.bf16.mxu0 0
  %1269 = vmatpush1.bf16.msra.mxu0 0
  %1270 = vmatprep.subr.bf16.mxu0 0
  %1271 = vmatpush1.bf16.msra.mxu0 0
  %1272 = vmatprep.subr.bf16.mxu0 0
  %1273 = vmatpush1.bf16.msra.mxu0 0
  %1274 = vmatprep.subr.bf16.mxu0 0
  %1275 = vmatpush1.bf16.msra.mxu0 0
  %1276 = vmatprep.subr.bf16.mxu0 0
  %1277 = vmatpush1.bf16.msra.mxu0 0
  %1278 = vmatprep.subr.bf16.mxu0 0
  %1279 = vmatpush1.bf16.msra.mxu0 0
  %1280 = vmatprep.subr.bf16.mxu0 0
  %1281 = vmatpush1.bf16.msra.mxu0 0
  %1282 = vmatprep.subr.bf16.mxu0 0
  %1283 = vmatpush1.bf16.msra.mxu0 0
  %1284 = vmatprep.subr.bf16.mxu0 0
  %1285 = vmatpush1.bf16.msra.mxu0 0
  %1286 = vmatprep.subr.bf16.mxu0 0
  %1287 = vmatpush1.bf16.msra.mxu0 0
  %1288 = vmatprep.subr.bf16.mxu0 0
  %1289 = vmatpush1.bf16.msra.mxu0 0
  %1290 = vmatprep.subr.bf16.mxu0 0
  %1291 = vmatpush1.bf16.msra.mxu0 0
  %1292 = vmatprep.subr.bf16.mxu0 0
  %1293 = vmatpush1.bf16.msra.mxu0 0
  %1294 = vmatprep.subr.bf16.mxu0 0
  %1295 = vmatpush1.bf16.msra.mxu0 0
  %1296 = vmatprep.mubr.bf16.mxu0 0
  %1297 = vmatmul.mubr.bf16.gmra.mrb[0].mxu0 %v1262
  %v1298 = vpop.f32.mrb[0].mxu0
  %v1299 = vadd.f32 %v1259, %v1298
  %v1300 = vpop.f32.mrb[0].mxu0
  %v1301 = vpop.f32.mrb[0].mxu0
  %v1302 = vpop.f32.mrb[0].mxu0
  %1303 = vdwg.mxu0
  %v1304 = vtanh.pop %v1299
  %v1305 = vpack.c.bf16 %v1304, %v1304
  %s1306 = scalar_lea.vmem %s4, 32
  %v1307 = vld [vmem:[%s1306] sm:$0xf]
  %v1308 = vld [vmem:[%s1306 + $0x4] sm:$0xf]
  %v1309 = vld [vmem:[%s1306 + $0x8] sm:$0xf]
  %v1310 = vld [vmem:[%s1306 + $0xc] sm:$0xf]
  %v1311 = vld [vmem:[%s6 + $0x2] sm:$0x1]
  %v1312 = vlaneseq
  %v1313 = vshrl.u32 %v1312, 7
  %v1314 = vsub.s32 0, %v1313
  %v1315 = vrot.slane %v1311, %v1314
  %v1320 = vunpack.c.l.b16 %v1307
  %v1321 = vunpack.c.l.b16 %v1308
  %v1322 = vunpack.c.l.b16 %v1309
  %v1323 = vunpack.c.l.b16 %v1310
  %v1324 = vpack.c.b16 %v1321, %v1320
  %v1325 = vpack.c.b16 %v1323, %v1322
  %v1329 = vsel %vm190, %v1305, 0
  %1331 = vmatprep.subr.bf16.mxu0 0
  %1332 = vmatpush1.bf16.msra.mxu0 %v1324
  %1333 = vmatprep.subr.bf16.mxu0 0
  %1334 = vmatpush1.bf16.msra.mxu0 %v1325
  %1335 = vmatprep.subr.bf16.mxu0 0
  %1336 = vmatpush1.bf16.msra.mxu0 0
  %1337 = vmatprep.subr.bf16.mxu0 0
  %1338 = vmatpush1.bf16.msra.mxu0 0
  %1339 = vmatprep.subr.bf16.mxu0 0
  %1340 = vmatpush1.bf16.msra.mxu0 0
  %1341 = vmatprep.subr.bf16.mxu0 0
  %1342 = vmatpush1.bf16.msra.mxu0 0
  %1343 = vmatprep.subr.bf16.mxu0 0
  %1344 = vmatpush1.bf16.msra.mxu0 0
  %1345 = vmatprep.subr.bf16.mxu0 0
  %1346 = vmatpush1.bf16.msra.mxu0 0
  %1347 = vmatprep.subr.bf16.mxu0 0
  %1348 = vmatpush1.bf16.msra.mxu0 0
  %1349 = vmatprep.subr.bf16.mxu0 0
  %1350 = vmatpush1.bf16.msra.mxu0 0
  %1351 = vmatprep.subr.bf16.mxu0 0
  %1352 = vmatpush1.bf16.msra.mxu0 0
  %1353 = vmatprep.subr.bf16.mxu0 0
  %1354 = vmatpush1.bf16.msra.mxu0 0
  %1355 = vmatprep.subr.bf16.mxu0 0
  %1356 = vmatpush1.bf16.msra.mxu0 0
  %1357 = vmatprep.subr.bf16.mxu0 0
  %1358 = vmatpush1.bf16.msra.mxu0 0
  %1359 = vmatprep.subr.bf16.mxu0 0
  %1360 = vmatpush1.bf16.msra.mxu0 0
  %1361 = vmatprep.subr.bf16.mxu0 0
  %1362 = vmatpush1.bf16.msra.mxu0 0
  %1363 = vmatprep.mubr.bf16.mxu0 0
  %1364 = vmatmul.mubr.bf16.gmra.mrb[0].mxu0 %v1329
  %v1365 = vpop.f32.mrb[0].mxu0
  %v1366 = vadd.f32 %v1315, %v1365
  %v1367 = vpop.f32.mrb[0].mxu0
  %v1368 = vpop.f32.mrb[0].mxu0
  %v1369 = vpop.f32.mrb[0].mxu0
  %1370 = vdwg.mxu0
  %v1371 = vtanh.pop %v1366
  %v1372 = vpack.c.bf16 %v1371, %v1371
  %s1373 = scalar_lea.vmem %s4, 48
  %v1374 = vld [vmem:[%s1373] sm:$0xf]
  %v1375 = vld [vmem:[%s1373 + $0x4] sm:$0xf]
  %v1376 = vld [vmem:[%s1373 + $0x8] sm:$0xf]
  %v1377 = vld [vmem:[%s1373 + $0xc] sm:$0xf]
  %v1378 = vld [vmem:[%s6 + $0x3] sm:$0x1]
  %v1379 = vlaneseq
  %v1380 = vshrl.u32 %v1379, 7
  %v1381 = vsub.s32 0, %v1380
  %v1382 = vrot.slane %v1378, %v1381
  %v1387 = vunpack.c.l.b16 %v1374
  %v1388 = vunpack.c.l.b16 %v1375
  %v1389 = vunpack.c.l.b16 %v1376
  %v1390 = vunpack.c.l.b16 %v1377
  %v1391 = vpack.c.b16 %v1388, %v1387
  %v1392 = vpack.c.b16 %v1390, %v1389
  %v1396 = vsel %vm190, %v1372, 0
  %1398 = vmatprep.subr.bf16.mxu0 0
  %1399 = vmatpush1.bf16.msra.mxu0 %v1391
  %1400 = vmatprep.subr.bf16.mxu0 0
  %1401 = vmatpush1.bf16.msra.mxu0 %v1392
  %1402 = vmatprep.subr.bf16.mxu0 0
  %1403 = vmatpush1.bf16.msra.mxu0 0
  %1404 = vmatprep.subr.bf16.mxu0 0
  %1405 = vmatpush1.bf16.msra.mxu0 0
  %1406 = vmatprep.subr.bf16.mxu0 0
  %1407 = vmatpush1.bf16.msra.mxu0 0
  %1408 = vmatprep.subr.bf16.mxu0 0
  %1409 = vmatpush1.bf16.msra.mxu0 0
  %1410 = vmatprep.subr.bf16.mxu0 0
  %1411 = vmatpush1.bf16.msra.mxu0 0
  %1412 = vmatprep.subr.bf16.mxu0 0
  %1413 = vmatpush1.bf16.msra.mxu0 0
  %1414 = vmatprep.subr.bf16.mxu0 0
  %1415 = vmatpush1.bf16.msra.mxu0 0
  %1416 = vmatprep.subr.bf16.mxu0 0
  %1417 = vmatpush1.bf16.msra.mxu0 0
  %1418 = vmatprep.subr.bf16.mxu0 0
  %1419 = vmatpush1.bf16.msra.mxu0 0
  %1420 = vmatprep.subr.bf16.mxu0 0
  %1421 = vmatpush1.bf16.msra.mxu0 0
  %1422 = vmatprep.subr.bf16.mxu0 0
  %1423 = vmatpush1.bf16.msra.mxu0 0
  %1424 = vmatprep.subr.bf16.mxu0 0
  %1425 = vmatpush1.bf16.msra.mxu0 0
  %1426 = vmatprep.subr.bf16.mxu0 0
  %1427 = vmatpush1.bf16.msra.mxu0 0
  %1428 = vmatprep.subr.bf16.mxu0 0
  %1429 = vmatpush1.bf16.msra.mxu0 0
  %1430 = vmatprep.mubr.bf16.mxu0 0
  %1431 = vmatmul.mubr.bf16.gmra.mrb[0].mxu0 %v1396
  %v1432 = vpop.f32.mrb[0].mxu0
  %v1433 = vadd.f32 %v1382, %v1432
  %v1434 = vpop.f32.mrb[0].mxu0
  %v1435 = vpop.f32.mrb[0].mxu0
  %v1436 = vpop.f32.mrb[0].mxu0
  %1437 = vdwg.mxu0
  %v1438 = vtanh.pop %v1433
  %v1439 = vpack.c.bf16 %v1438, %v1438
  %s1440 = scalar_lea.vmem %s4, 64
  %v1441 = vld [vmem:[%s1440] sm:$0xf]
  %v1442 = vld [vmem:[%s1440 + $0x4] sm:$0xf]
  %v1443 = vld [vmem:[%s1440 + $0x8] sm:$0xf]
  %v1444 = vld [vmem:[%s1440 + $0xc] sm:$0xf]
  %v1445 = vld [vmem:[%s6 + $0x4] sm:$0x1]
  %v1446 = vlaneseq
  %v1447 = vshrl.u32 %v1446, 7
  %v1448 = vsub.s32 0, %v1447
  %v1449 = vrot.slane %v1445, %v1448
  %v1454 = vunpack.c.l.b16 %v1441
  %v1455 = vunpack.c.l.b16 %v1442
  %v1456 = vunpack.c.l.b16 %v1443
  %v1457 = vunpack.c.l.b16 %v1444
  %v1458 = vpack.c.b16 %v1455, %v1454
  %v1459 = vpack.c.b16 %v1457, %v1456
  %v1463 = vsel %vm190, %v1439, 0
  %1465 = vmatprep.subr.bf16.mxu0 0
  %1466 = vmatpush1.bf16.msra.mxu0 %v1458
  %1467 = vmatprep.subr.bf16.mxu0 0
  %1468 = vmatpush1.bf16.msra.mxu0 %v1459
  %1469 = vmatprep.subr.bf16.mxu0 0
  %1470 = vmatpush1.bf16.msra.mxu0 0
  %1471 = vmatprep.subr.bf16.mxu0 0
  %1472 = vmatpush1.bf16.msra.mxu0 0
  %1473 = vmatprep.subr.bf16.mxu0 0
  %1474 = vmatpush1.bf16.msra.mxu0 0
  %1475 = vmatprep.subr.bf16.mxu0 0
  %1476 = vmatpush1.bf16.msra.mxu0 0
  %1477 = vmatprep.subr.bf16.mxu0 0
  %1478 = vmatpush1.bf16.msra.mxu0 0
  %1479 = vmatprep.subr.bf16.mxu0 0
  %1480 = vmatpush1.bf16.msra.mxu0 0
  %1481 = vmatprep.subr.bf16.mxu0 0
  %1482 = vmatpush1.bf16.msra.mxu0 0
  %1483 = vmatprep.subr.bf16.mxu0 0
  %1484 = vmatpush1.bf16.msra.mxu0 0
  %1485 = vmatprep.subr.bf16.mxu0 0
  %1486 = vmatpush1.bf16.msra.mxu0 0
  %1487 = vmatprep.subr.bf16.mxu0 0
  %1488 = vmatpush1.bf16.msra.mxu0 0
  %1489 = vmatprep.subr.bf16.mxu0 0
  %1490 = vmatpush1.bf16.msra.mxu0 0
  %1491 = vmatprep.subr.bf16.mxu0 0
  %1492 = vmatpush1.bf16.msra.mxu0 0
  %1493 = vmatprep.subr.bf16.mxu0 0
  %1494 = vmatpush1.bf16.msra.mxu0 0
  %1495 = vmatprep.subr.bf16.mxu0 0
  %1496 = vmatpush1.bf16.msra.mxu0 0
  %1497 = vmatprep.mubr.bf16.mxu0 0
  %1498 = vmatmul.mubr.bf16.gmra.mrb[0].mxu0 %v1463
  %v1499 = vpop.f32.mrb[0].mxu0
  %v1500 = vadd.f32 %v1449, %v1499
  %v1501 = vpop.f32.mrb[0].mxu0
  %v1502 = vpop.f32.mrb[0].mxu0
  %v1503 = vpop.f32.mrb[0].mxu0
  %1504 = vdwg.mxu0
  %v1505 = vtanh.pop %v1500
  %v1506 = vpack.c.bf16 %v1505, %v1505
  %s1507 = scalar_lea.vmem %s4, 80
  %v1508 = vld [vmem:[%s1507] sm:$0xf]
  %v1509 = vld [vmem:[%s1507 + $0x4] sm:$0xf]
  %v1510 = vld [vmem:[%s1507 + $0x8] sm:$0xf]
  %v1511 = vld [vmem:[%s1507 + $0xc] sm:$0xf]
  %v1512 = vld [vmem:[%s6 + $0x5] sm:$0x1]
  %v1513 = vlaneseq
  %v1514 = vshrl.u32 %v1513, 7
  %v1515 = vsub.s32 0, %v1514
  %v1516 = vrot.slane %v1512, %v1515
  %v1521 = vunpack.c.l.b16 %v1508
  %v1522 = vunpack.c.l.b16 %v1509
  %v1523 = vunpack.c.l.b16 %v1510
  %v1524 = vunpack.c.l.b16 %v1511
  %v1525 = vpack.c.b16 %v1522, %v1521
  %v1526 = vpack.c.b16 %v1524, %v1523
  %v1530 = vsel %vm190, %v1506, 0
  %1532 = vmatprep.subr.bf16.mxu0 0
  %1533 = vmatpush1.bf16.msra.mxu0 %v1525
  %1534 = vmatprep.subr.bf16.mxu0 0
  %1535 = vmatpush1.bf16.msra.mxu0 %v1526
  %1536 = vmatprep.subr.bf16.mxu0 0
  %1537 = vmatpush1.bf16.msra.mxu0 0
  %1538 = vmatprep.subr.bf16.mxu0 0
  %1539 = vmatpush1.bf16.msra.mxu0 0
  %1540 = vmatprep.subr.bf16.mxu0 0
  %1541 = vmatpush1.bf16.msra.mxu0 0
  %1542 = vmatprep.subr.bf16.mxu0 0
  %1543 = vmatpush1.bf16.msra.mxu0 0
  %1544 = vmatprep.subr.bf16.mxu0 0
  %1545 = vmatpush1.bf16.msra.mxu0 0
  %1546 = vmatprep.subr.bf16.mxu0 0
  %1547 = vmatpush1.bf16.msra.mxu0 0
  %1548 = vmatprep.subr.bf16.mxu0 0
  %1549 = vmatpush1.bf16.msra.mxu0 0
  %1550 = vmatprep.subr.bf16.mxu0 0
  %1551 = vmatpush1.bf16.msra.mxu0 0
  %1552 = vmatprep.subr.bf16.mxu0 0
  %1553 = vmatpush1.bf16.msra.mxu0 0
  %1554 = vmatprep.subr.bf16.mxu0 0
  %1555 = vmatpush1.bf16.msra.mxu0 0
  %1556 = vmatprep.subr.bf16.mxu0 0
  %1557 = vmatpush1.bf16.msra.mxu0 0
  %1558 = vmatprep.subr.bf16.mxu0 0
  %1559 = vmatpush1.bf16.msra.mxu0 0
  %1560 = vmatprep.subr.bf16.mxu0 0
  %1561 = vmatpush1.bf16.msra.mxu0 0
  %1562 = vmatprep.subr.bf16.mxu0 0
  %1563 = vmatpush1.bf16.msra.mxu0 0
  %1564 = vmatprep.mubr.bf16.mxu0 0
  %1565 = vmatmul.mubr.bf16.gmra.mrb[0].mxu0 %v1530
  %v1566 = vpop.f32.mrb[0].mxu0
  %v1567 = vadd.f32 %v1516, %v1566
  %v1568 = vpop.f32.mrb[0].mxu0
  %v1569 = vpop.f32.mrb[0].mxu0
  %v1570 = vpop.f32.mrb[0].mxu0
  %1571 = vdwg.mxu0
  %v1572 = vtanh.pop %v1567
  %v1573 = vpack.c.bf16 %v1572, %v1572
  %s1574 = scalar_lea.vmem %s4, 96
  %v1575 = vld [vmem:[%s1574] sm:$0xf]
  %v1576 = vld [vmem:[%s1574 + $0x4] sm:$0xf]
  %v1577 = vld [vmem:[%s1574 + $0x8] sm:$0xf]
  %v1578 = vld [vmem:[%s1574 + $0xc] sm:$0xf]
  %v1579 = vld [vmem:[%s6 + $0x6] sm:$0x1]
  %v1580 = vlaneseq
  %v1581 = vshrl.u32 %v1580, 7
  %v1582 = vsub.s32 0, %v1581
  %v1583 = vrot.slane %v1579, %v1582
  %v1588 = vunpack.c.l.b16 %v1575
  %v1589 = vunpack.c.l.b16 %v1576
  %v1590 = vunpack.c.l.b16 %v1577
  %v1591 = vunpack.c.l.b16 %v1578
  %v1592 = vpack.c.b16 %v1589, %v1588
  %v1593 = vpack.c.b16 %v1591, %v1590
  %v1597 = vsel %vm190, %v1573, 0
  %1599 = vmatprep.subr.bf16.mxu0 0
  %1600 = vmatpush1.bf16.msra.mxu0 %v1592
  %1601 = vmatprep.subr.bf16.mxu0 0
  %1602 = vmatpush1.bf16.msra.mxu0 %v1593
  %1603 = vmatprep.subr.bf16.mxu0 0
  %1604 = vmatpush1.bf16.msra.mxu0 0
  %1605 = vmatprep.subr.bf16.mxu0 0
  %1606 = vmatpush1.bf16.msra.mxu0 0
  %1607 = vmatprep.subr.bf16.mxu0 0
  %1608 = vmatpush1.bf16.msra.mxu0 0
  %1609 = vmatprep.subr.bf16.mxu0 0
  %1610 = vmatpush1.bf16.msra.mxu0 0
  %1611 = vmatprep.subr.bf16.mxu0 0
  %1612 = vmatpush1.bf16.msra.mxu0 0
  %1613 = vmatprep.subr.bf16.mxu0 0
  %1614 = vmatpush1.bf16.msra.mxu0 0
  %1615 = vmatprep.subr.bf16.mxu0 0
  %1616 = vmatpush1.bf16.msra.mxu0 0
  %1617 = vmatprep.subr.bf16.mxu0 0
  %1618 = vmatpush1.bf16.msra.mxu0 0
  %1619 = vmatprep.subr.bf16.mxu0 0
  %1620 = vmatpush1.bf16.msra.mxu0 0
  %1621 = vmatprep.subr.bf16.mxu0 0
  %1622 = vmatpush1.bf16.msra.mxu0 0
  %1623 = vmatprep.subr.bf16.mxu0 0
  %1624 = vmatpush1.bf16.msra.mxu0 0
  %1625 = vmatprep.subr.bf16.mxu0 0
  %1626 = vmatpush1.bf16.msra.mxu0 0
  %1627 = vmatprep.subr.bf16.mxu0 0
  %1628 = vmatpush1.bf16.msra.mxu0 0
  %1629 = vmatprep.subr.bf16.mxu0 0
  %1630 = vmatpush1.bf16.msra.mxu0 0
  %1631 = vmatprep.mubr.bf16.mxu0 0
  %1632 = vmatmul.mubr.bf16.gmra.mrb[0].mxu0 %v1597
  %v1633 = vpop.f32.mrb[0].mxu0
  %v1634 = vadd.f32 %v1583, %v1633
  %v1635 = vpop.f32.mrb[0].mxu0
  %v1636 = vpop.f32.mrb[0].mxu0
  %v1637 = vpop.f32.mrb[0].mxu0
  %1638 = vdwg.mxu0
  %v1639 = vtanh.pop %v1634
  %v1640 = vpack.c.bf16 %v1639, %v1639
  %s1641 = scalar_lea.vmem %s4, 112
  %v1642 = vld [vmem:[%s1641] sm:$0xf]
  %v1643 = vld [vmem:[%s1641 + $0x4] sm:$0xf]
  %v1644 = vld [vmem:[%s1641 + $0x8] sm:$0xf]
  %v1645 = vld [vmem:[%s1641 + $0xc] sm:$0xf]
  %v1646 = vld [vmem:[%s6 + $0x7] sm:$0x1]
  %v1647 = vlaneseq
  %v1648 = vshrl.u32 %v1647, 7
  %v1649 = vsub.s32 0, %v1648
  %v1650 = vrot.slane %v1646, %v1649
  %v1655 = vunpack.c.l.b16 %v1642
  %v1656 = vunpack.c.l.b16 %v1643
  %v1657 = vunpack.c.l.b16 %v1644
  %v1658 = vunpack.c.l.b16 %v1645
  %v1659 = vpack.c.b16 %v1656, %v1655
  %v1660 = vpack.c.b16 %v1658, %v1657
  %v1664 = vsel %vm190, %v1640, 0
  %1666 = vmatprep.subr.bf16.mxu0 0
  %1667 = vmatpush1.bf16.msra.mxu0 %v1659
  %1668 = vmatprep.subr.bf16.mxu0 0
  %1669 = vmatpush1.bf16.msra.mxu0 %v1660
  %1670 = vmatprep.subr.bf16.mxu0 0
  %1671 = vmatpush1.bf16.msra.mxu0 0
  %1672 = vmatprep.subr.bf16.mxu0 0
  %1673 = vmatpush1.bf16.msra.mxu0 0
  %1674 = vmatprep.subr.bf16.mxu0 0
  %1675 = vmatpush1.bf16.msra.mxu0 0
  %1676 = vmatprep.subr.bf16.mxu0 0
  %1677 = vmatpush1.bf16.msra.mxu0 0
  %1678 = vmatprep.subr.bf16.mxu0 0
  %1679 = vmatpush1.bf16.msra.mxu0 0
  %1680 = vmatprep.subr.bf16.mxu0 0
  %1681 = vmatpush1.bf16.msra.mxu0 0
  %1682 = vmatprep.subr.bf16.mxu0 0
  %1683 = vmatpush1.bf16.msra.mxu0 0
  %1684 = vmatprep.subr.bf16.mxu0 0
  %1685 = vmatpush1.bf16.msra.mxu0 0
  %1686 = vmatprep.subr.bf16.mxu0 0
  %1687 = vmatpush1.bf16.msra.mxu0 0
  %1688 = vmatprep.subr.bf16.mxu0 0
  %1689 = vmatpush1.bf16.msra.mxu0 0
  %1690 = vmatprep.subr.bf16.mxu0 0
  %1691 = vmatpush1.bf16.msra.mxu0 0
  %1692 = vmatprep.subr.bf16.mxu0 0
  %1693 = vmatpush1.bf16.msra.mxu0 0
  %1694 = vmatprep.subr.bf16.mxu0 0
  %1695 = vmatpush1.bf16.msra.mxu0 0
  %1696 = vmatprep.subr.bf16.mxu0 0
  %1697 = vmatpush1.bf16.msra.mxu0 0
  %1698 = vmatprep.mubr.bf16.mxu0 0
  %1699 = vmatmul.mubr.bf16.gmra.mrb[0].mxu0 %v1664
  %v1700 = vpop.f32.mrb[0].mxu0
  %v1701 = vadd.f32 %v1650, %v1700
  %v1702 = vpop.f32.mrb[0].mxu0
  %v1703 = vpop.f32.mrb[0].mxu0
  %v1704 = vpop.f32.mrb[0].mxu0
  %1705 = vdwg.mxu0
  %v1706 = vtanh.pop %v1701
  %v1707 = vpack.c.bf16 %v1706, %v1706
  %s1708 = scalar_lea.vmem %s4, 128
  %v1709 = vld [vmem:[%s1708] sm:$0xf]
  %v1710 = vld [vmem:[%s1708 + $0x4] sm:$0xf]
  %v1711 = vld [vmem:[%s1708 + $0x8] sm:$0xf]
  %v1712 = vld [vmem:[%s1708 + $0xc] sm:$0xf]
  %v1713 = vld [vmem:[%s6 + $0x8] sm:$0x1]
  %v1714 = vlaneseq
  %v1715 = vshrl.u32 %v1714, 7
  %v1716 = vsub.s32 0, %v1715
  %v1717 = vrot.slane %v1713, %v1716
  %v1722 = vunpack.c.l.b16 %v1709
  %v1723 = vunpack.c.l.b16 %v1710
  %v1724 = vunpack.c.l.b16 %v1711
  %v1725 = vunpack.c.l.b16 %v1712
  %v1726 = vpack.c.b16 %v1723, %v1722
  %v1727 = vpack.c.b16 %v1725, %v1724
  %v1731 = vsel %vm190, %v1707, 0
  %1733 = vmatprep.subr.bf16.mxu0 0
  %1734 = vmatpush1.bf16.msra.mxu0 %v1726
  %1735 = vmatprep.subr.bf16.mxu0 0
  %1736 = vmatpush1.bf16.msra.mxu0 %v1727
  %1737 = vmatprep.subr.bf16.mxu0 0
  %1738 = vmatpush1.bf16.msra.mxu0 0
  %1739 = vmatprep.subr.bf16.mxu0 0
  %1740 = vmatpush1.bf16.msra.mxu0 0
  %1741 = vmatprep.subr.bf16.mxu0 0
  %1742 = vmatpush1.bf16.msra.mxu0 0
  %1743 = vmatprep.subr.bf16.mxu0 0
  %1744 = vmatpush1.bf16.msra.mxu0 0
  %1745 = vmatprep.subr.bf16.mxu0 0
  %1746 = vmatpush1.bf16.msra.mxu0 0
  %1747 = vmatprep.subr.bf16.mxu0 0
  %1748 = vmatpush1.bf16.msra.mxu0 0
  %1749 = vmatprep.subr.bf16.mxu0 0
  %1750 = vmatpush1.bf16.msra.mxu0 0
  %1751 = vmatprep.subr.bf16.mxu0 0
  %1752 = vmatpush1.bf16.msra.mxu0 0
  %1753 = vmatprep.subr.bf16.mxu0 0
  %1754 = vmatpush1.bf16.msra.mxu0 0
  %1755 = vmatprep.subr.bf16.mxu0 0
  %1756 = vmatpush1.bf16.msra.mxu0 0
  %1757 = vmatprep.subr.bf16.mxu0 0
  %1758 = vmatpush1.bf16.msra.mxu0 0
  %1759 = vmatprep.subr.bf16.mxu0 0
  %1760 = vmatpush1.bf16.msra.mxu0 0
  %1761 = vmatprep.subr.bf16.mxu0 0
  %1762 = vmatpush1.bf16.msra.mxu0 0
  %1763 = vmatprep.subr.bf16.mxu0 0
  %1764 = vmatpush1.bf16.msra.mxu0 0
  %1765 = vmatprep.mubr.bf16.mxu0 0
  %1766 = vmatmul.mubr.bf16.gmra.mrb[0].mxu0 %v1731
  %v1767 = vpop.f32.mrb[0].mxu0
  %v1768 = vadd.f32 %v1717, %v1767
  %v1769 = vpop.f32.mrb[0].mxu0
  %v1770 = vpop.f32.mrb[0].mxu0
  %v1771 = vpop.f32.mrb[0].mxu0
  %1772 = vdwg.mxu0
  %v1773 = vtanh.pop %v1768
  %v1774 = vpack.c.bf16 %v1773, %v1773
  %s1775 = scalar_lea.vmem %s4, 144
  %v1776 = vld [vmem:[%s1775] sm:$0xf]
  %v1777 = vld [vmem:[%s1775 + $0x4] sm:$0xf]
  %v1778 = vld [vmem:[%s1775 + $0x8] sm:$0xf]
  %v1779 = vld [vmem:[%s1775 + $0xc] sm:$0xf]
  %v1780 = vld [vmem:[%s6 + $0x9] sm:$0x1]
  %v1781 = vlaneseq
  %v1782 = vshrl.u32 %v1781, 7
  %v1783 = vsub.s32 0, %v1782
  %v1784 = vrot.slane %v1780, %v1783
  %v1789 = vunpack.c.l.b16 %v1776
  %v1790 = vunpack.c.l.b16 %v1777
  %v1791 = vunpack.c.l.b16 %v1778
  %v1792 = vunpack.c.l.b16 %v1779
  %v1793 = vpack.c.b16 %v1790, %v1789
  %v1794 = vpack.c.b16 %v1792, %v1791
  %v1798 = vsel %vm190, %v1774, 0
  %1800 = vmatprep.subr.bf16.mxu0 0
  %1801 = vmatpush1.bf16.msra.mxu0 %v1793
  %1802 = vmatprep.subr.bf16.mxu0 0
  %1803 = vmatpush1.bf16.msra.mxu0 %v1794
  %1804 = vmatprep.subr.bf16.mxu0 0
  %1805 = vmatpush1.bf16.msra.mxu0 0
  %1806 = vmatprep.subr.bf16.mxu0 0
  %1807 = vmatpush1.bf16.msra.mxu0 0
  %1808 = vmatprep.subr.bf16.mxu0 0
  %1809 = vmatpush1.bf16.msra.mxu0 0
  %1810 = vmatprep.subr.bf16.mxu0 0
  %1811 = vmatpush1.bf16.msra.mxu0 0
  %1812 = vmatprep.subr.bf16.mxu0 0
  %1813 = vmatpush1.bf16.msra.mxu0 0
  %1814 = vmatprep.subr.bf16.mxu0 0
  %1815 = vmatpush1.bf16.msra.mxu0 0
  %1816 = vmatprep.subr.bf16.mxu0 0
  %1817 = vmatpush1.bf16.msra.mxu0 0
  %1818 = vmatprep.subr.bf16.mxu0 0
  %1819 = vmatpush1.bf16.msra.mxu0 0
  %1820 = vmatprep.subr.bf16.mxu0 0
  %1821 = vmatpush1.bf16.msra.mxu0 0
  %1822 = vmatprep.subr.bf16.mxu0 0
  %1823 = vmatpush1.bf16.msra.mxu0 0
  %1824 = vmatprep.subr.bf16.mxu0 0
  %1825 = vmatpush1.bf16.msra.mxu0 0
  %1826 = vmatprep.subr.bf16.mxu0 0
  %1827 = vmatpush1.bf16.msra.mxu0 0
  %1828 = vmatprep.subr.bf16.mxu0 0
  %1829 = vmatpush1.bf16.msra.mxu0 0
  %1830 = vmatprep.subr.bf16.mxu0 0
  %1831 = vmatpush1.bf16.msra.mxu0 0
  %1832 = vmatprep.mubr.bf16.mxu0 0
  %1833 = vmatmul.mubr.bf16.gmra.mrb[0].mxu0 %v1798
  %v1834 = vpop.f32.mrb[0].mxu0
  %v1835 = vadd.f32 %v1784, %v1834
  %v1836 = vpop.f32.mrb[0].mxu0
  %v1837 = vpop.f32.mrb[0].mxu0
  %v1838 = vpop.f32.mrb[0].mxu0
  %1839 = vdwg.mxu0
  %v1840 = vtanh.pop %v1835
  %v1841 = vpack.c.bf16 %v1840, %v1840
  %s1842 = scalar_lea.vmem %s4, 160
  %v1843 = vld [vmem:[%s1842] sm:$0xf]
  %v1844 = vld [vmem:[%s1842 + $0x4] sm:$0xf]
  %v1845 = vld [vmem:[%s1842 + $0x8] sm:$0xf]
  %v1846 = vld [vmem:[%s1842 + $0xc] sm:$0xf]
  %v1847 = vld [vmem:[%s6 + $0xa] sm:$0x1]
  %v1848 = vlaneseq
  %v1849 = vshrl.u32 %v1848, 7
  %v1850 = vsub.s32 0, %v1849
  %v1851 = vrot.slane %v1847, %v1850
  %v1856 = vunpack.c.l.b16 %v1843
  %v1857 = vunpack.c.l.b16 %v1844
  %v1858 = vunpack.c.l.b16 %v1845
  %v1859 = vunpack.c.l.b16 %v1846
  %v1860 = vpack.c.b16 %v1857, %v1856
  %v1861 = vpack.c.b16 %v1859, %v1858
  %v1865 = vsel %vm190, %v1841, 0
  %1867 = vmatprep.subr.bf16.mxu0 0
  %1868 = vmatpush1.bf16.msra.mxu0 %v1860
  %1869 = vmatprep.subr.bf16.mxu0 0
  %1870 = vmatpush1.bf16.msra.mxu0 %v1861
  %1871 = vmatprep.subr.bf16.mxu0 0
  %1872 = vmatpush1.bf16.msra.mxu0 0
  %1873 = vmatprep.subr.bf16.mxu0 0
  %1874 = vmatpush1.bf16.msra.mxu0 0
  %1875 = vmatprep.subr.bf16.mxu0 0
  %1876 = vmatpush1.bf16.msra.mxu0 0
  %1877 = vmatprep.subr.bf16.mxu0 0
  %1878 = vmatpush1.bf16.msra.mxu0 0
  %1879 = vmatprep.subr.bf16.mxu0 0
  %1880 = vmatpush1.bf16.msra.mxu0 0
  %1881 = vmatprep.subr.bf16.mxu0 0
  %1882 = vmatpush1.bf16.msra.mxu0 0
  %1883 = vmatprep.subr.bf16.mxu0 0
  %1884 = vmatpush1.bf16.msra.mxu0 0
  %1885 = vmatprep.subr.bf16.mxu0 0
  %1886 = vmatpush1.bf16.msra.mxu0 0
  %1887 = vmatprep.subr.bf16.mxu0 0
  %1888 = vmatpush1.bf16.msra.mxu0 0
  %1889 = vmatprep.subr.bf16.mxu0 0
  %1890 = vmatpush1.bf16.msra.mxu0 0
  %1891 = vmatprep.subr.bf16.mxu0 0
  %1892 = vmatpush1.bf16.msra.mxu0 0
  %1893 = vmatprep.subr.bf16.mxu0 0
  %1894 = vmatpush1.bf16.msra.mxu0 0
  %1895 = vmatprep.subr.bf16.mxu0 0
  %1896 = vmatpush1.bf16.msra.mxu0 0
  %1897 = vmatprep.subr.bf16.mxu0 0
  %1898 = vmatpush1.bf16.msra.mxu0 0
  %1899 = vmatprep.mubr.bf16.mxu0 0
  %1900 = vmatmul.mubr.bf16.gmra.mrb[0].mxu0 %v1865
  %v1901 = vpop.f32.mrb[0].mxu0
  %v1902 = vadd.f32 %v1851, %v1901
  %v1903 = vpop.f32.mrb[0].mxu0
  %v1904 = vpop.f32.mrb[0].mxu0
  %v1905 = vpop.f32.mrb[0].mxu0
  %1906 = vdwg.mxu0
  %v1907 = vtanh.pop %v1902
  %v1908 = vpack.c.bf16 %v1907, %v1907
  %s1909 = scalar_lea.vmem %s4, 176
  %v1910 = vld [vmem:[%s1909] sm:$0xf]
  %v1911 = vld [vmem:[%s1909 + $0x4] sm:$0xf]
  %v1912 = vld [vmem:[%s1909 + $0x8] sm:$0xf]
  %v1913 = vld [vmem:[%s1909 + $0xc] sm:$0xf]
  %v1914 = vld [vmem:[%s6 + $0xb] sm:$0x1]
  %v1915 = vlaneseq
  %v1916 = vshrl.u32 %v1915, 7
  %v1917 = vsub.s32 0, %v1916
  %v1918 = vrot.slane %v1914, %v1917
  %v1923 = vunpack.c.l.b16 %v1910
  %v1924 = vunpack.c.l.b16 %v1911
  %v1925 = vunpack.c.l.b16 %v1912
  %v1926 = vunpack.c.l.b16 %v1913
  %v1927 = vpack.c.b16 %v1924, %v1923
  %v1928 = vpack.c.b16 %v1926, %v1925
  %v1932 = vsel %vm190, %v1908, 0
  %1934 = vmatprep.subr.bf16.mxu0 0
  %1935 = vmatpush1.bf16.msra.mxu0 %v1927
  %1936 = vmatprep.subr.bf16.mxu0 0
  %1937 = vmatpush1.bf16.msra.mxu0 %v1928
  %1938 = vmatprep.subr.bf16.mxu0 0
  %1939 = vmatpush1.bf16.msra.mxu0 0
  %1940 = vmatprep.subr.bf16.mxu0 0
  %1941 = vmatpush1.bf16.msra.mxu0 0
  %1942 = vmatprep.subr.bf16.mxu0 0
  %1943 = vmatpush1.bf16.msra.mxu0 0
  %1944 = vmatprep.subr.bf16.mxu0 0
  %1945 = vmatpush1.bf16.msra.mxu0 0
  %1946 = vmatprep.subr.bf16.mxu0 0
  %1947 = vmatpush1.bf16.msra.mxu0 0
  %1948 = vmatprep.subr.bf16.mxu0 0
  %1949 = vmatpush1.bf16.msra.mxu0 0
  %1950 = vmatprep.subr.bf16.mxu0 0
  %1951 = vmatpush1.bf16.msra.mxu0 0
  %1952 = vmatprep.subr.bf16.mxu0 0
  %1953 = vmatpush1.bf16.msra.mxu0 0
  %1954 = vmatprep.subr.bf16.mxu0 0
  %1955 = vmatpush1.bf16.msra.mxu0 0
  %1956 = vmatprep.subr.bf16.mxu0 0
  %1957 = vmatpush1.bf16.msra.mxu0 0
  %1958 = vmatprep.subr.bf16.mxu0 0
  %1959 = vmatpush1.bf16.msra.mxu0 0
  %1960 = vmatprep.subr.bf16.mxu0 0
  %1961 = vmatpush1.bf16.msra.mxu0 0
  %1962 = vmatprep.subr.bf16.mxu0 0
  %1963 = vmatpush1.bf16.msra.mxu0 0
  %1964 = vmatprep.subr.bf16.mxu0 0
  %1965 = vmatpush1.bf16.msra.mxu0 0
  %1966 = vmatprep.mubr.bf16.mxu0 0
  %1967 = vmatmul.mubr.bf16.gmra.mrb[0].mxu0 %v1932
  %v1968 = vpop.f32.mrb[0].mxu0
  %v1969 = vadd.f32 %v1918, %v1968
  %v1970 = vpop.f32.mrb[0].mxu0
  %v1971 = vpop.f32.mrb[0].mxu0
  %v1972 = vpop.f32.mrb[0].mxu0
  %1973 = vdwg.mxu0
  %v1974 = vtanh.pop %v1969
  %v1975 = vld [vmem:[%s5] sm:$0x1]
  %v1977 = vlaneseq
  %v1978 = vshrl.u32 %v1977, 7
  %v1979 = vsub.s32 0, %v1978
  %v1980 = vrot.slane %v1975, %v1979
  %v1982 = vmul.f32 %v1974, %v1980
  %v1983 = vsel %vm190, %v1982, 0.0
  %1984 = vadd.xlane.f32.xlu0 %v1983
  %v1985 = vpop.xlane.xlu0 %1984
  %v1986 = vlaneseq
  %v1987 = vshrl.u32 %v1986, 7
  %v1988 = vsub.s32 0, %v1987
  %v1989 = vrot.slane %v29, %v1988
  %v1990 = vadd.f32 %v1985, %v1989
  %v1991 = vxor.u32 %v1990, 2147483648
  %v1992 = vmul.f32 %v1991, 1.442695
  %v1993 = vpow.pop %v1992
  %v1994 = vadd.f32 %v1993, 1.0
  %v1995 = vrcp.pop %v1994
  %v1996 = vmul.f32 1.0, %v1995
  %vm1997 = vcmask 7168
  %1998 = vst.msk [vmem:[%s7] sm:$0xff] %vm1997, %v1996
  // Predicated region
  $region30: #{lstm_layered_extractors.1} parent=0 // pred_check
    _
  $region31: #{lstm_layered_extractors.1} parent=0 // pred_check_branch
    %2000 = sbr.rel (0) target = $region33
  $region32: #{lstm_layered_extractors.1} parent=0 // pred_region
    _
  $region33: #{lstm_layered_extractors.1} parent=0 // pred_fallthru
    _
  // Predicated region
  $region34: #{lstm_layered_extractors.1} parent=0 // pred_check
    _
  $region35: #{lstm_layered_extractors.1} parent=0 // pred_check_branch
    %2002 = sbr.rel (0) target = $region37
  $region36: #{lstm_layered_extractors.1} parent=0 // pred_region
    _
  $region37: #{lstm_layered_extractors.1} parent=0 // pred_fallthru
    _

</llo_original>
